<compile_context>
chip_gen: v6e
topology: v6e:2x2x1
jax: 0.10.0
libtpu: 0.0.40
codegen_flags: <defaults>
</compile_context>

<pallas_src>
import functools

import jax
import jax.numpy as jnp
from jax.experimental import pallas as pl
from jax.experimental.pallas import tpu as pltpu


def _fp_kernel(n_layers, m, m_chunk, mxu_dtype, exact, *refs):
    # refs = [unknown_t, known, unknow_feats, known_feats,
    #         W0a, W0b, scale0, shift0, (W, scale, shift) * (n_layers-1), out]
    unknown_t_ref, known_ref, unkf_ref, knf_ref = refs[:4]
    out_ref = refs[-1]
    layer_refs = refs[4:-1]

    ut = unknown_t_ref[0]            # (3, TN)  lane-dense xyz of this n-tile
    unkf = unkf_ref[0]               # (C1, TN) features to propagate to (mxu dtype)
    tn = ut.shape[1]
    c2 = knf_ref.shape[1]

    BIG_D = jnp.float32(1e30)        # "not a candidate yet"
    MASKED = jnp.float32(2e30)       # "already selected" (> BIG_D)
    BIG_C = jnp.int32(1 << 30)

    # --- three_nn: online top-3 over m-chunks (exact diffs, VPU/XLU) ---------
    # Running best-3 state, (3, TN); rows stay sorted by construction. The
    # first/lowest global index wins on ties, matching the reference kernel.
    best_d = jnp.full((3, tn), BIG_D, jnp.float32)   # best-3 squared distances
    best_c = jnp.full((3, tn), m, jnp.int32)         # best-3 global indices

    for c0 in range(0, m, m_chunk):
        c1_ = min(c0 + m_chunk, m)
        tm = c1_ - c0
        kc = known_ref[0, c0:c1_, :]                 # (tm, 3) f32
        d2 = jnp.zeros((tm, tn), jnp.float32)
        for a in range(3):
            diff = kc[:, a:a + 1] - ut[a:a + 1, :]   # (tm,1)-(1,TN) -> (tm,TN)
            d2 = d2 + diff * diff
        col = jax.lax.broadcasted_iota(jnp.int32, (tm, tn), 0) + c0
        work = jnp.concatenate([best_d, d2], axis=0)     # (3+tm, TN)
        cols = jnp.concatenate([best_c, col], axis=0)
        nd, nc = [], []
        for _ in range(3):
            mv = jnp.min(work, axis=0, keepdims=True)                    # (1,TN)
            sc = jnp.min(jnp.where(work == mv, cols, BIG_C),
                         axis=0, keepdims=True)                          # (1,TN)
            nd.append(mv)
            nc.append(sc)
            work = jnp.where(cols == sc, MASKED, work)
        best_d = jnp.concatenate(nd, axis=0)             # (3, TN), sorted
        best_c = jnp.concatenate(nc, axis=0)

    # --- inverse-distance weights; normalization deferred past the matmul ----
    w = 1.0 / (jnp.sqrt(best_d) + 1e-8)                  # (3, TN)
    norm = jnp.sum(w, axis=0, keepdims=True)             # (1, TN)

    # --- three_interpolate: per-chunk (C2,tm) x (tm,TN) MXU matmuls ----------
    interp = jnp.zeros((c2, tn), jnp.float32)
    for c0 in range(0, m, m_chunk):
        c1_ = min(c0 + m_chunk, m)
        tm = c1_ - c0
        col = jax.lax.broadcasted_iota(jnp.int32, (tm, tn), 0) + c0
        wc = jnp.zeros((tm, tn), jnp.float32)
        for k in range(3):
            wc = wc + jnp.where(col == best_c[k:k + 1, :], w[k:k + 1, :], 0.0)
        kf = knf_ref[0, :, c0:c1_]                       # (C2, tm), mxu dtype
        interp = interp + jax.lax.dot_general(
            kf, wc.astype(mxu_dtype),
            dimension_numbers=(((1,), (0,)), ((), ())),
            preferred_element_type=jnp.float32)          # (C2, TN) f32 acc

    inv_norm = (1.0 / norm) if exact else pl.reciprocal(norm, approx=True)
    interp = (interp * inv_norm).astype(mxu_dtype)       # normalized (C2, TN)

    # --- SharedMLP, channel-first so n stays on the lane axis ----------------
    # concat([interp, unkf], channel) is folded into a row-split of W0
    # (W0a / W0b); weights are pre-transposed to (Cout, Cin) in the wrapper.
    w0a = layer_refs[0][...]                             # (H0, C2)
    w0b = layer_refs[1][...]                             # (H0, C1)
    s0 = layer_refs[2][...]                              # (H0, 1)
    b0 = layer_refs[3][...]                              # (H0, 1)
    h = (jnp.dot(w0a, interp, preferred_element_type=jnp.float32)
         + jnp.dot(w0b, unkf, preferred_element_type=jnp.float32))   # (H0, TN)
    h = jnp.maximum(h * s0 + b0, 0.0)                    # folded BN + ReLU

    for li in range(1, n_layers):
        wl = layer_refs[4 + 3 * (li - 1)][...]           # (Hn, Hp)
        sl = layer_refs[5 + 3 * (li - 1)][...]           # (Hn, 1)
        bl = layer_refs[6 + 3 * (li - 1)][...]           # (Hn, 1)
        h = jnp.dot(wl, h.astype(mxu_dtype), preferred_element_type=jnp.float32)
        h = jnp.maximum(h * sl + bl, 0.0)

    out_ref[0] = h.astype(out_ref.dtype)                 # (c_out, TN)


def pointnet_fp_module(unknown, known, unknow_feats, known_feats, params, *,
                       mxu_dtype=jnp.bfloat16, out_dtype=jnp.float32,
                       tile_n=None, m_chunk=None):
    """unknown (B,n,3), known (B,m,3), unknow_feats (B,C1,n), known_feats (B,C2,m)
    -> (B, mlp[-1], n), matching the PyTorch module (eval-mode BatchNorm).

    mxu_dtype: dtype of MXU operands (bf16 default, f32 accumulation); use
    jnp.float32 for bit-faithful matmuls. out_dtype: output dtype (f32 default;
    bf16 halves the writeback if the consumer tolerates it). tile_n / m_chunk
    default to VMEM-aware choices; for large n use multiples of 128."""
    B, n, _ = unknown.shape
    _, m, _ = known.shape
    c1 = unknow_feats.shape[1]
    c2 = known_feats.shape[1]
    n_layers = len(params)
    c_out = params[-1][0].shape[1]
    assert m >= 3, "three_nn needs at least 3 known points"

    if m_chunk is None:
        m_chunk = min(m, 1024)
    m_chunk = max(3, min(int(m_chunk), m))

    feat_bytes = jnp.dtype(mxu_dtype).itemsize
    out_bytes = jnp.dtype(out_dtype).itemsize
    exact = jnp.dtype(mxu_dtype) == jnp.dtype(jnp.float32)
    h_max = max(int(W.shape[1]) for W, _, _ in params)
    param_bytes = sum(int(W.size) * feat_bytes + int(s.size) * 4 + int(b.size) * 4
                      for W, s, b in params)

    try:  # per-generation VMEM budget (v7x: 64 MiB; v5e/v6e: 128 MiB)
        vmem_cap = int(pltpu.get_tpu_info().vmem_capacity_bytes)
    except Exception:
        vmem_cap = 64 * 1024 * 1024   # conservative fallback

    def _sub(v):
        return -(-int(v) // 8) * 8

    def _lane(v):
        return -(-int(v) // 128) * 128

    def _vmem_est(tn_):
        tn_l = _lane(tn_)
        tm_s = _sub(m_chunk)
        # double-buffered pipelined blocks (+ resident per-b blocks, + params)
        blocks = 2 * (_sub(3) * tn_l * 4                       # unknown_t tile
                      + _sub(c1) * tn_l * feat_bytes           # unknow_feats tile
                      + _sub(c_out) * tn_l * out_bytes         # output tile
                      + _sub(m) * _lane(3) * 4                 # known (resident)
                      + _sub(c2) * _lane(m) * feat_bytes       # known_feats (resident)
                      + param_bytes)
        # in-kernel temporaries: 3-NN chunk slabs + per-chunk weight matrix +
        # interp / MLP activations (conservative sum).
        temps = (8 * (tm_s + 8) * tn_l * 4
                 + tm_s * tn_l * (4 + feat_bytes)
                 + (_sub(c2) + 2 * _sub(h_max)) * tn_l * 4)
        return blocks + temps

    if tile_n is None:
        budget = int(vmem_cap * 0.45)
        tile_n = 128
        for cand in (1024, 768, 512, 384, 256, 128):
            if cand <= max(n, 128) and _vmem_est(cand) <= budget:
                tile_n = cand
                break
    tn = n if n <= tile_n else tile_n
    num_n_tiles = pl.cdiv(n, tn)

    vmem_limit = int(min(max(2 * _vmem_est(tn) + (8 << 20), 32 << 20),
                         int(vmem_cap * 0.75)))

    # Layout / dtype plumbing (all tiny or dtype-only, done once in HBM).
    unknown_t = jnp.transpose(unknown, (0, 2, 1))            # (B, 3, n)
    unkf_q = unknow_feats.astype(mxu_dtype)                  # cast once, not per tile
    knf_q = known_feats.astype(mxu_dtype)

    # Flatten SharedMLP params: split + pre-transpose W0 so the channel concat
    # never materializes and every MLP matmul is a plain (Cout,Cin)x(Cin,TN).
    w0, s0, b0 = params[0]
    flat_params = [jnp.transpose(w0[:c2, :]).astype(mxu_dtype),   # (H0, C2)
                   jnp.transpose(w0[c2:, :]).astype(mxu_dtype),   # (H0, C1)
                   s0, b0]
    for (W, s, b) in params[1:]:
        flat_params += [jnp.transpose(W).astype(mxu_dtype), s, b]

    in_specs = [
        pl.BlockSpec((1, 3, tn), lambda b, i: (b, 0, i)),    # unknown xyz tile
        pl.BlockSpec((1, m, 3), lambda b, i: (b, 0, 0)),     # known xyz (resident)
        pl.BlockSpec((1, c1, tn), lambda b, i: (b, 0, i)),   # unknow_feats tile
        pl.BlockSpec((1, c2, m), lambda b, i: (b, 0, 0)),    # known_feats (resident)
    ]
    for p in flat_params:
        in_specs.append(pl.BlockSpec(p.shape, lambda b, i: (0, 0)))

    # Rough cost estimate for XLA scheduling.
    mlp_flops = sum(2 * n * int(W.shape[0]) * int(W.shape[1]) for W, _, _ in params)
    flops = B * (9 * n * m            # pairwise squared distances
                 + 21 * n * m         # online top-3 merge passes
                 + 6 * n * m          # per-chunk weight-matrix rebuild
                 + 2 * n * m * c2     # interpolation matmuls
                 + mlp_flops)
    transcendentals = B * n * 4       # 3x sqrt + 1x reciprocal per point
    bytes_accessed = (4 * (unknown.size + known.size)
                      + feat_bytes * (unkf_q.size + knf_q.size)
                      + out_bytes * B * c_out * n
                      + sum(int(p.size) * p.dtype.itemsize for p in flat_params))

    # Grid order (B, n-tiles): with i innermost, the per-b known/known_feats
    # blocks are fetched once per b and stay VMEM-resident across n-tiles.
    out = pl.pallas_call(
        functools.partial(_fp_kernel, n_layers, m, m_chunk, mxu_dtype, exact),
        out_shape=jax.ShapeDtypeStruct((B, c_out, n), out_dtype),
        grid=(B, num_n_tiles),
        in_specs=in_specs,
        out_specs=pl.BlockSpec((1, c_out, tn), lambda b, i: (b, 0, i)),
        compiler_params=pltpu.CompilerParams(
            dimension_semantics=("parallel", "parallel"),
            vmem_limit_bytes=vmem_limit),
        cost_estimate=pl.CostEstimate(flops=int(flops),
                                      transcendentals=int(transcendentals),
                                      bytes_accessed=int(bytes_accessed)),
    )(unknown_t, known, unkf_q, knf_q, *flat_params)

    return out                                               # (B, c_out, n)


def _reference(unknown, known, unknow_feats, known_feats, params):
    """Pure-JAX f32 reference for validation (same semantics)."""
    d2 = jnp.sum((unknown[:, :, None, :] - known[:, None, :, :]) ** 2, -1)  # (B,n,m)
    neg, idx = jax.lax.top_k(-d2, 3)
    dist = jnp.sqrt(jnp.maximum(-neg, 0.0))
    w = 1.0 / (dist + 1e-8)
    w = w / jnp.sum(w, -1, keepdims=True)                                   # (B,n,3)
    knf_t = jnp.transpose(known_feats, (0, 2, 1))                           # (B,m,C2)
    gathered = jax.vmap(lambda f, i: f[i])(knf_t, idx)                      # (B,n,3,C2)
    interp = jnp.sum(w[..., None] * gathered, axis=2)                       # (B,n,C2)
    feats = jnp.concatenate([interp, jnp.transpose(unknow_feats, (0, 2, 1))], -1)
    h = feats
    for (W, scale, shift) in params:
        h = jnp.maximum(jnp.einsum("bnc,cd->bnd", h, W) * scale[:, 0] + shift[:, 0],
                        0.0)
    return jnp.transpose(h, (0, 2, 1))


def make_params(key, mlp, bn_eps=1e-5):
    """Deterministic SharedMLP params. Conv2d 1x1 (bias=False) + BatchNorm2d.
    BatchNorm uses eval-mode running stats folded into per-channel scale/shift
    of shape (Cout, 1) (channel-first broadcast inside the kernel)."""
    params = []
    for i in range(len(mlp) - 1):
        key, kw = jax.random.split(key)
        W = jax.random.normal(kw, (mlp[i], mlp[i + 1]), jnp.float32) * 0.1
        gamma = jnp.ones((mlp[i + 1], 1), jnp.float32)
        beta = jnp.zeros((mlp[i + 1], 1), jnp.float32)
        run_mean = jnp.zeros((mlp[i + 1], 1), jnp.float32)
        run_var = jnp.ones((mlp[i + 1], 1), jnp.float32)
        scale = gamma / jnp.sqrt(run_var + bn_eps)
        shift = beta - run_mean * scale
        params.append((W, scale, shift))
    return params


if __name__ == "__main__":
    key = jax.random.PRNGKey(0)

    def run_case(B, n, m, C1, C2, mlp, case_key, **kw):
        k1, k2, k3, k4, kp = jax.random.split(case_key, 5)
        unknown = jax.random.uniform(k1, (B, n, 3), jnp.float32)       # (B, n, 3)
        known = jax.random.uniform(k2, (B, m, 3), jnp.float32)         # (B, m, 3)
        unknow_feats = jax.random.normal(k3, (B, C1, n), jnp.float32)  # (B, C1, n)
        known_feats = jax.random.normal(k4, (B, C2, m), jnp.float32)   # (B, C2, m)
        params = make_params(kp, mlp)
        ref = _reference(unknown, known, unknow_feats, known_feats, params)
        out = pointnet_fp_module(unknown, known, unknow_feats, known_feats,
                                 params, **kw)
        out = jax.block_until_ready(out)
        assert out.shape == (B, mlp[-1], n), out.shape
        return out, ref

    # 1) Small shapes, exact-precision path (f32 MXU operands) — tight check.
    key, k = jax.random.split(key)
    out, ref = run_case(2, 16, 8, 4, 8, [12, 32, 16], k, mxu_dtype=jnp.float32)
    assert jnp.allclose(out, ref, rtol=1e-3, atol=1e-3), \
        float(jnp.max(jnp.abs(out - ref)))

    # 2) Multi n-tile grid + multi m-chunk online top-3 (exact f32 path).
    key, k = jax.random.split(key)
    out, ref = run_case(2, 256, 16, 4, 8, [12, 32, 16], k,
                        mxu_dtype=jnp.float32, tile_n=128, m_chunk=8)
    assert jnp.allclose(out, ref, rtol=1e-3, atol=1e-3), \
        float(jnp.max(jnp.abs(out - ref)))

    # 3) Default mixed-precision path (bf16 MXU operands, f32 accumulation).
    key, k = jax.random.split(key)
    out, ref = run_case(2, 16, 8, 4, 8, [12, 32, 16], k)
    assert jnp.allclose(out, ref, rtol=1e-1, atol=1e-1), \
        float(jnp.max(jnp.abs(out - ref)))

    print("KERNEL_OK")
</pallas_src>

<mosaic_0001>
module attributes {stable_mosaic.version = 11 : i64} {
  func.func @_fp_kernel(%arg0: i32, %arg1: i32, %arg2: memref<1x3x16xf32, #tpu.memory_space<vmem>>, %arg3: memref<1x8x3xf32, #tpu.memory_space<vmem>>, %arg4: memref<1x4x16xf32, #tpu.memory_space<vmem>>, %arg5: memref<1x8x8xf32, #tpu.memory_space<vmem>>, %arg6: memref<32x8xf32, #tpu.memory_space<vmem>>, %arg7: memref<32x4xf32, #tpu.memory_space<vmem>>, %arg8: memref<32x1xf32, #tpu.memory_space<vmem>>, %arg9: memref<32x1xf32, #tpu.memory_space<vmem>>, %arg10: memref<16x32xf32, #tpu.memory_space<vmem>>, %arg11: memref<16x1xf32, #tpu.memory_space<vmem>>, %arg12: memref<16x1xf32, #tpu.memory_space<vmem>>, %arg13: memref<1x16x16xf32, #tpu.memory_space<vmem>>) attributes {dimension_semantics = [#tpu.dimension_semantics<parallel>, #tpu.dimension_semantics<parallel>], iteration_bounds = array<i64: 2, 1>, scalar_prefetch = 0 : i64, scratch_operands = 0 : i64, tpu.core_type = #tpu.core_type<tc>, window_params = [{transform_indices = @transform_0, window_bounds = array<i64: 1, 3, 16>}, {transform_indices = @transform_1, window_bounds = array<i64: 1, 8, 3>}, {transform_indices = @transform_2, window_bounds = array<i64: 1, 4, 16>}, {transform_indices = @transform_3, window_bounds = array<i64: 1, 8, 8>}, {pipeline_mode = #tpu.pipeline_mode<synchronous>, transform_indices = @transform_4, window_bounds = array<i64: 32, 8>}, {pipeline_mode = #tpu.pipeline_mode<synchronous>, transform_indices = @transform_5, window_bounds = array<i64: 32, 4>}, {pipeline_mode = #tpu.pipeline_mode<synchronous>, transform_indices = @transform_6, window_bounds = array<i64: 32, 1>}, {pipeline_mode = #tpu.pipeline_mode<synchronous>, transform_indices = @transform_7, window_bounds = array<i64: 32, 1>}, {pipeline_mode = #tpu.pipeline_mode<synchronous>, transform_indices = @transform_8, window_bounds = array<i64: 16, 32>}, {pipeline_mode = #tpu.pipeline_mode<synchronous>, transform_indices = @transform_9, window_bounds = array<i64: 16, 1>}, {pipeline_mode = #tpu.pipeline_mode<synchronous>, transform_indices = @transform_10, window_bounds = array<i64: 16, 1>}, {transform_indices = @transform_11, window_bounds = array<i64: 1, 16, 16>}]} {
    %c0 = arith.constant 0 : index
    %c0_0 = arith.constant 0 : index
    %c0_1 = arith.constant 0 : index
    %0 = vector.load %arg2[%c0, %c0_0, %c0_1] : memref<1x3x16xf32, #tpu.memory_space<vmem>>, vector<1x3x16xf32>
    %1 = vector.shape_cast %0 : vector<1x3x16xf32> to vector<3x16xf32>
    %c0_2 = arith.constant 0 : index
    %c0_3 = arith.constant 0 : index
    %c0_4 = arith.constant 0 : index
    %2 = vector.load %arg4[%c0_2, %c0_3, %c0_4] : memref<1x4x16xf32, #tpu.memory_space<vmem>>, vector<1x4x16xf32>
    %3 = vector.shape_cast %2 : vector<1x4x16xf32> to vector<4x16xf32>
    %cst = arith.constant 1.000000e+30 : f32
    %4 = vector.broadcast %cst : f32 to vector<3x16xf32>
    %c8_i32 = arith.constant 8 : i32
    %5 = vector.broadcast %c8_i32 : i32 to vector<3x16xi32>
    %c0_5 = arith.constant 0 : index
    %c0_6 = arith.constant 0 : index
    %c0_7 = arith.constant 0 : index
    %6 = vector.load %arg3[%c0_5, %c0_6, %c0_7] : memref<1x8x3xf32, #tpu.memory_space<vmem>>, vector<1x8x3xf32>
    %7 = vector.shape_cast %6 : vector<1x8x3xf32> to vector<8x3xf32>
    %cst_8 = arith.constant 0.000000e+00 : f32
    %8 = vector.broadcast %cst_8 : f32 to vector<8x16xf32>
    %9 = vector.extract_strided_slice %7 {offsets = [0, 0], sizes = [8, 1], strides = [1, 1]} : vector<8x3xf32> to vector<8x1xf32>
    %10 = vector.extract_strided_slice %1 {offsets = [0, 0], sizes = [1, 16], strides = [1, 1]} : vector<3x16xf32> to vector<1x16xf32>
    %11 = vector.broadcast %9 : vector<8x1xf32> to vector<8x16xf32>
    %12 = vector.broadcast %10 : vector<1x16xf32> to vector<8x16xf32>
    %13 = arith.subf %11, %12 : vector<8x16xf32>
    %14 = arith.mulf %13, %13 : vector<8x16xf32>
    %15 = arith.addf %8, %14 : vector<8x16xf32>
    %16 = vector.extract_strided_slice %7 {offsets = [0, 1], sizes = [8, 1], strides = [1, 1]} : vector<8x3xf32> to vector<8x1xf32>
    %17 = vector.extract_strided_slice %1 {offsets = [1, 0], sizes = [1, 16], strides = [1, 1]} : vector<3x16xf32> to vector<1x16xf32>
    %18 = vector.broadcast %16 : vector<8x1xf32> to vector<8x16xf32>
    %19 = vector.broadcast %17 : vector<1x16xf32> to vector<8x16xf32>
    %20 = arith.subf %18, %19 : vector<8x16xf32>
    %21 = arith.mulf %20, %20 : vector<8x16xf32>
    %22 = arith.addf %15, %21 : vector<8x16xf32>
    %23 = vector.extract_strided_slice %7 {offsets = [0, 2], sizes = [8, 1], strides = [1, 1]} : vector<8x3xf32> to vector<8x1xf32>
    %24 = vector.extract_strided_slice %1 {offsets = [2, 0], sizes = [1, 16], strides = [1, 1]} : vector<3x16xf32> to vector<1x16xf32>
    %25 = vector.broadcast %23 : vector<8x1xf32> to vector<8x16xf32>
    %26 = vector.broadcast %24 : vector<1x16xf32> to vector<8x16xf32>
    %27 = arith.subf %25, %26 : vector<8x16xf32>
    %28 = arith.mulf %27, %27 : vector<8x16xf32>
    %29 = arith.addf %22, %28 : vector<8x16xf32>
    %30 = tpu.iota {dimensions = array<i32: 0>} : vector<8x16xi32>
    %c0_i32 = arith.constant 0 : i32
    %31 = vector.broadcast %c0_i32 : i32 to vector<8x16xi32>
    %32 = arith.addi %30, %31 : vector<8x16xi32>
    %33 = tpu.concatenate %4, %29 in 0 : vector<3x16xf32>, vector<8x16xf32> -> vector<11x16xf32>
    %34 = tpu.concatenate %5, %32 in 0 : vector<3x16xi32>, vector<8x16xi32> -> vector<11x16xi32>
    %cst_9 = arith.constant dense<0x7F800000> : vector<16xf32>
    %35 = vector.multi_reduction <minimumf>, %33, %cst_9 [0] : vector<11x16xf32> to vector<16xf32>
    %36 = vector.shape_cast %35 : vector<16xf32> to vector<1x16xf32>
    %37 = vector.broadcast %36 : vector<1x16xf32> to vector<11x16xf32>
    %38 = arith.cmpf oeq, %33, %37 : vector<11x16xf32>
    %c1073741824_i32 = arith.constant 1073741824 : i32
    %39 = vector.broadcast %c1073741824_i32 : i32 to vector<11x16xi32>
    %40 = arith.select %38, %34, %39 : vector<11x16xi1>, vector<11x16xi32>
    %cst_10 = arith.constant dense<2147483647> : vector<16xi32>
    %41 = vector.multi_reduction <minsi>, %40, %cst_10 [0] : vector<11x16xi32> to vector<16xi32>
    %42 = vector.shape_cast %41 : vector<16xi32> to vector<1x16xi32>
    %43 = vector.broadcast %42 : vector<1x16xi32> to vector<11x16xi32>
    %44 = arith.cmpi eq, %34, %43 : vector<11x16xi32>
    %cst_11 = arith.constant 2.000000e+30 : f32
    %45 = vector.broadcast %cst_11 : f32 to vector<11x16xf32>
    %46 = arith.select %44, %45, %33 : vector<11x16xi1>, vector<11x16xf32>
    %cst_12 = arith.constant dense<0x7F800000> : vector<16xf32>
    %47 = vector.multi_reduction <minimumf>, %46, %cst_12 [0] : vector<11x16xf32> to vector<16xf32>
    %48 = vector.shape_cast %47 : vector<16xf32> to vector<1x16xf32>
    %49 = vector.broadcast %48 : vector<1x16xf32> to vector<11x16xf32>
    %50 = arith.cmpf oeq, %46, %49 : vector<11x16xf32>
    %c1073741824_i32_13 = arith.constant 1073741824 : i32
    %51 = vector.broadcast %c1073741824_i32_13 : i32 to vector<11x16xi32>
    %52 = arith.select %50, %34, %51 : vector<11x16xi1>, vector<11x16xi32>
    %cst_14 = arith.constant dense<2147483647> : vector<16xi32>
    %53 = vector.multi_reduction <minsi>, %52, %cst_14 [0] : vector<11x16xi32> to vector<16xi32>
    %54 = vector.shape_cast %53 : vector<16xi32> to vector<1x16xi32>
    %55 = vector.broadcast %54 : vector<1x16xi32> to vector<11x16xi32>
    %56 = arith.cmpi eq, %34, %55 : vector<11x16xi32>
    %cst_15 = arith.constant 2.000000e+30 : f32
    %57 = vector.broadcast %cst_15 : f32 to vector<11x16xf32>
    %58 = arith.select %56, %57, %46 : vector<11x16xi1>, vector<11x16xf32>
    %cst_16 = arith.constant dense<0x7F800000> : vector<16xf32>
    %59 = vector.multi_reduction <minimumf>, %58, %cst_16 [0] : vector<11x16xf32> to vector<16xf32>
    %60 = vector.shape_cast %59 : vector<16xf32> to vector<1x16xf32>
    %61 = vector.broadcast %60 : vector<1x16xf32> to vector<11x16xf32>
    %62 = arith.cmpf oeq, %58, %61 : vector<11x16xf32>
    %c1073741824_i32_17 = arith.constant 1073741824 : i32
    %63 = vector.broadcast %c1073741824_i32_17 : i32 to vector<11x16xi32>
    %64 = arith.select %62, %34, %63 : vector<11x16xi1>, vector<11x16xi32>
    %cst_18 = arith.constant dense<2147483647> : vector<16xi32>
    %65 = vector.multi_reduction <minsi>, %64, %cst_18 [0] : vector<11x16xi32> to vector<16xi32>
    %66 = vector.shape_cast %65 : vector<16xi32> to vector<1x16xi32>
    %67 = tpu.concatenate %36, %48, %60 in 0 : vector<1x16xf32>, vector<1x16xf32>, vector<1x16xf32> -> vector<3x16xf32>
    %68 = tpu.concatenate %42, %54, %66 in 0 : vector<1x16xi32>, vector<1x16xi32>, vector<1x16xi32> -> vector<3x16xi32>
    %69 = math.sqrt %67 : vector<3x16xf32>
    %cst_19 = arith.constant 9.99999993E-9 : f32
    %70 = vector.broadcast %cst_19 : f32 to vector<3x16xf32>
    %71 = arith.addf %69, %70 : vector<3x16xf32>
    %cst_20 = arith.constant 1.000000e+00 : f32
    %72 = vector.broadcast %cst_20 : f32 to vector<3x16xf32>
    %73 = arith.divf %72, %71 : vector<3x16xf32>
    %cst_21 = arith.constant dense<0.000000e+00> : vector<16xf32>
    %74 = vector.multi_reduction <add>, %73, %cst_21 [0] : vector<3x16xf32> to vector<16xf32>
    %75 = vector.shape_cast %74 : vector<16xf32> to vector<1x16xf32>
    %cst_22 = arith.constant 0.000000e+00 : f32
    %76 = vector.broadcast %cst_22 : f32 to vector<8x16xf32>
    %77 = tpu.iota {dimensions = array<i32: 0>} : vector<8x16xi32>
    %c0_i32_23 = arith.constant 0 : i32
    %78 = vector.broadcast %c0_i32_23 : i32 to vector<8x16xi32>
    %79 = arith.addi %77, %78 : vector<8x16xi32>
    %cst_24 = arith.constant 0.000000e+00 : f32
    %80 = vector.broadcast %cst_24 : f32 to vector<8x16xf32>
    %81 = vector.extract_strided_slice %68 {offsets = [0, 0], sizes = [1, 16], strides = [1, 1]} : vector<3x16xi32> to vector<1x16xi32>
    %82 = vector.broadcast %81 : vector<1x16xi32> to vector<8x16xi32>
    %83 = arith.cmpi eq, %79, %82 : vector<8x16xi32>
    %84 = vector.extract_strided_slice %73 {offsets = [0, 0], sizes = [1, 16], strides = [1, 1]} : vector<3x16xf32> to vector<1x16xf32>
    %cst_25 = arith.constant 0.000000e+00 : f32
    %85 = vector.shape_cast %84 : vector<1x16xf32> to vector<1x16xf32>
    %86 = vector.broadcast %85 : vector<1x16xf32> to vector<8x16xf32>
    %87 = vector.broadcast %cst_25 : f32 to vector<8x16xf32>
    %88 = arith.select %83, %86, %87 : vector<8x16xi1>, vector<8x16xf32>
    %89 = arith.addf %80, %88 : vector<8x16xf32>
    %90 = vector.extract_strided_slice %68 {offsets = [1, 0], sizes = [1, 16], strides = [1, 1]} : vector<3x16xi32> to vector<1x16xi32>
    %91 = vector.broadcast %90 : vector<1x16xi32> to vector<8x16xi32>
    %92 = arith.cmpi eq, %79, %91 : vector<8x16xi32>
    %93 = vector.extract_strided_slice %73 {offsets = [1, 0], sizes = [1, 16], strides = [1, 1]} : vector<3x16xf32> to vector<1x16xf32>
    %cst_26 = arith.constant 0.000000e+00 : f32
    %94 = vector.shape_cast %93 : vector<1x16xf32> to vector<1x16xf32>
    %95 = vector.broadcast %94 : vector<1x16xf32> to vector<8x16xf32>
    %96 = vector.broadcast %cst_26 : f32 to vector<8x16xf32>
    %97 = arith.select %92, %95, %96 : vector<8x16xi1>, vector<8x16xf32>
    %98 = arith.addf %89, %97 : vector<8x16xf32>
    %99 = vector.extract_strided_slice %68 {offsets = [2, 0], sizes = [1, 16], strides = [1, 1]} : vector<3x16xi32> to vector<1x16xi32>
    %100 = vector.broadcast %99 : vector<1x16xi32> to vector<8x16xi32>
    %101 = arith.cmpi eq, %79, %100 : vector<8x16xi32>
    %102 = vector.extract_strided_slice %73 {offsets = [2, 0], sizes = [1, 16], strides = [1, 1]} : vector<3x16xf32> to vector<1x16xf32>
    %cst_27 = arith.constant 0.000000e+00 : f32
    %103 = vector.shape_cast %102 : vector<1x16xf32> to vector<1x16xf32>
    %104 = vector.broadcast %103 : vector<1x16xf32> to vector<8x16xf32>
    %105 = vector.broadcast %cst_27 : f32 to vector<8x16xf32>
    %106 = arith.select %101, %104, %105 : vector<8x16xi1>, vector<8x16xf32>
    %107 = arith.addf %98, %106 : vector<8x16xf32>
    %c0_28 = arith.constant 0 : index
    %c0_29 = arith.constant 0 : index
    %c0_30 = arith.constant 0 : index
    %108 = vector.load %arg5[%c0_28, %c0_29, %c0_30] : memref<1x8x8xf32, #tpu.memory_space<vmem>>, vector<1x8x8xf32>
    %109 = vector.shape_cast %108 : vector<1x8x8xf32> to vector<8x8xf32>
    %cst_31 = arith.constant dense<0.000000e+00> : vector<8x16xf32>
    %110 = tpu.matmul %109, %107, %cst_31 {dimension_numbers = #tpu.dot_dimension_numbers<[1], [0], [0], [1], [0, 0, 1, 1], [], []>} : vector<8x8xf32>, vector<8x16xf32>, vector<8x16xf32> -> vector<8x16xf32>
    %111 = arith.addf %76, %110 : vector<8x16xf32>
    %cst_32 = arith.constant 1.000000e+00 : f32
    %112 = vector.broadcast %cst_32 : f32 to vector<1x16xf32>
    %113 = arith.divf %112, %75 : vector<1x16xf32>
    %114 = vector.broadcast %113 : vector<1x16xf32> to vector<8x16xf32>
    %115 = arith.mulf %111, %114 : vector<8x16xf32>
    %c0_33 = arith.constant 0 : index
    %c0_34 = arith.constant 0 : index
    %116 = vector.load %arg6[%c0_33, %c0_34] : memref<32x8xf32, #tpu.memory_space<vmem>>, vector<32x8xf32>
    %c0_35 = arith.constant 0 : index
    %c0_36 = arith.constant 0 : index
    %117 = vector.load %arg7[%c0_35, %c0_36] : memref<32x4xf32, #tpu.memory_space<vmem>>, vector<32x4xf32>
    %c0_37 = arith.constant 0 : index
    %c0_38 = arith.constant 0 : index
    %118 = vector.load %arg8[%c0_37, %c0_38] : memref<32x1xf32, #tpu.memory_space<vmem>>, vector<32x1xf32>
    %c0_39 = arith.constant 0 : index
    %c0_40 = arith.constant 0 : index
    %119 = vector.load %arg9[%c0_39, %c0_40] : memref<32x1xf32, #tpu.memory_space<vmem>>, vector<32x1xf32>
    %cst_41 = arith.constant dense<0.000000e+00> : vector<32x16xf32>
    %120 = tpu.matmul %116, %115, %cst_41 {dimension_numbers = #tpu.dot_dimension_numbers<[1], [0], [0], [1], [0, 0, 1, 1], [], []>} : vector<32x8xf32>, vector<8x16xf32>, vector<32x16xf32> -> vector<32x16xf32>
    %cst_42 = arith.constant dense<0.000000e+00> : vector<32x16xf32>
    %121 = tpu.matmul %117, %3, %cst_42 {dimension_numbers = #tpu.dot_dimension_numbers<[1], [0], [0], [1], [0, 0, 1, 1], [], []>} : vector<32x4xf32>, vector<4x16xf32>, vector<32x16xf32> -> vector<32x16xf32>
    %122 = arith.addf %120, %121 : vector<32x16xf32>
    %123 = vector.broadcast %118 : vector<32x1xf32> to vector<32x16xf32>
    %124 = arith.mulf %122, %123 : vector<32x16xf32>
    %125 = vector.broadcast %119 : vector<32x1xf32> to vector<32x16xf32>
    %126 = arith.addf %124, %125 : vector<32x16xf32>
    %cst_43 = arith.constant 0.000000e+00 : f32
    %127 = vector.broadcast %cst_43 : f32 to vector<32x16xf32>
    %128 = arith.maximumf %126, %127 : vector<32x16xf32>
    %c0_44 = arith.constant 0 : index
    %c0_45 = arith.constant 0 : index
    %129 = vector.load %arg10[%c0_44, %c0_45] : memref<16x32xf32, #tpu.memory_space<vmem>>, vector<16x32xf32>
    %c0_46 = arith.constant 0 : index
    %c0_47 = arith.constant 0 : index
    %130 = vector.load %arg11[%c0_46, %c0_47] : memref<16x1xf32, #tpu.memory_space<vmem>>, vector<16x1xf32>
    %c0_48 = arith.constant 0 : index
    %c0_49 = arith.constant 0 : index
    %131 = vector.load %arg12[%c0_48, %c0_49] : memref<16x1xf32, #tpu.memory_space<vmem>>, vector<16x1xf32>
    %cst_50 = arith.constant dense<0.000000e+00> : vector<16x16xf32>
    %132 = tpu.matmul %129, %128, %cst_50 {dimension_numbers = #tpu.dot_dimension_numbers<[1], [0], [0], [1], [0, 0, 1, 1], [], []>} : vector<16x32xf32>, vector<32x16xf32>, vector<16x16xf32> -> vector<16x16xf32>
    %133 = vector.broadcast %130 : vector<16x1xf32> to vector<16x16xf32>
    %134 = arith.mulf %132, %133 : vector<16x16xf32>
    %135 = vector.broadcast %131 : vector<16x1xf32> to vector<16x16xf32>
    %136 = arith.addf %134, %135 : vector<16x16xf32>
    %cst_51 = arith.constant 0.000000e+00 : f32
    %137 = vector.broadcast %cst_51 : f32 to vector<16x16xf32>
    %138 = arith.maximumf %136, %137 : vector<16x16xf32>
    %c0_52 = arith.constant 0 : index
    %c0_53 = arith.constant 0 : index
    %c0_54 = arith.constant 0 : index
    %139 = vector.load %arg13[%c0_52, %c0_53, %c0_54] : memref<1x16x16xf32, #tpu.memory_space<vmem>>, vector<1x16x16xf32>
    %140 = vector.shape_cast %139 : vector<1x16x16xf32> to vector<16x16xf32>
    %141 = vector.shape_cast %138 : vector<16x16xf32> to vector<1x16x16xf32>
    tpu.vector_store %arg13[%c0_52, %c0_53, %c0_54], %141 {strides = array<i32>} : memref<1x16x16xf32, #tpu.memory_space<vmem>>, vector<1x16x16xf32>,
    return
  }
  func.func @transform_0(%arg0: i32, %arg1: i32) -> (i32, i32, i32) {
    %c0_i32 = arith.constant 0 : i32
    %c0_i32_0 = arith.constant 0 : i32
    return %arg0, %c0_i32, %arg1 : i32, i32, i32
  }
  func.func @transform_1(%arg0: i32, %arg1: i32) -> (i32, i32, i32) {
    %c0_i32 = arith.constant 0 : i32
    %c0_i32_0 = arith.constant 0 : i32
    %c0_i32_1 = arith.constant 0 : i32
    return %arg0, %c0_i32, %c0_i32_0 : i32, i32, i32
  }
  func.func @transform_2(%arg0: i32, %arg1: i32) -> (i32, i32, i32) {
    %c0_i32 = arith.constant 0 : i32
    %c0_i32_0 = arith.constant 0 : i32
    return %arg0, %c0_i32, %arg1 : i32, i32, i32
  }
  func.func @transform_3(%arg0: i32, %arg1: i32) -> (i32, i32, i32) {
    %c0_i32 = arith.constant 0 : i32
    %c0_i32_0 = arith.constant 0 : i32
    %c0_i32_1 = arith.constant 0 : i32
    return %arg0, %c0_i32, %c0_i32_0 : i32, i32, i32
  }
  func.func @transform_4(%arg0: i32, %arg1: i32) -> (i32, i32) {
    %c0_i32 = arith.constant 0 : i32
    %c0_i32_0 = arith.constant 0 : i32
    %c0_i32_1 = arith.constant 0 : i32
    return %c0_i32, %c0_i32_0 : i32, i32
  }
  func.func @transform_5(%arg0: i32, %arg1: i32) -> (i32, i32) {
    %c0_i32 = arith.constant 0 : i32
    %c0_i32_0 = arith.constant 0 : i32
    %c0_i32_1 = arith.constant 0 : i32
    return %c0_i32, %c0_i32_0 : i32, i32
  }
  func.func @transform_6(%arg0: i32, %arg1: i32) -> (i32, i32) {
    %c0_i32 = arith.constant 0 : i32
    %c0_i32_0 = arith.constant 0 : i32
    %c0_i32_1 = arith.constant 0 : i32
    return %c0_i32, %c0_i32_0 : i32, i32
  }
  func.func @transform_7(%arg0: i32, %arg1: i32) -> (i32, i32) {
    %c0_i32 = arith.constant 0 : i32
    %c0_i32_0 = arith.constant 0 : i32
    %c0_i32_1 = arith.constant 0 : i32
    return %c0_i32, %c0_i32_0 : i32, i32
  }
  func.func @transform_8(%arg0: i32, %arg1: i32) -> (i32, i32) {
    %c0_i32 = arith.constant 0 : i32
    %c0_i32_0 = arith.constant 0 : i32
    %c0_i32_1 = arith.constant 0 : i32
    return %c0_i32, %c0_i32_0 : i32, i32
  }
  func.func @transform_9(%arg0: i32, %arg1: i32) -> (i32, i32) {
    %c0_i32 = arith.constant 0 : i32
    %c0_i32_0 = arith.constant 0 : i32
    %c0_i32_1 = arith.constant 0 : i32
    return %c0_i32, %c0_i32_0 : i32, i32
  }
  func.func @transform_10(%arg0: i32, %arg1: i32) -> (i32, i32) {
    %c0_i32 = arith.constant 0 : i32
    %c0_i32_0 = arith.constant 0 : i32
    %c0_i32_1 = arith.constant 0 : i32
    return %c0_i32, %c0_i32_0 : i32, i32
  }
  func.func @transform_11(%arg0: i32, %arg1: i32) -> (i32, i32, i32) {
    %c0_i32 = arith.constant 0 : i32
    %c0_i32_0 = arith.constant 0 : i32
    return %arg0, %c0_i32, %arg1 : i32, i32, i32
  }
}

</mosaic_0001>

<llo_original>
// kernel: tpu_custom_call.1
$region0: #{tpu_custom_call.1}
  #allocation0 [shape = 'u32[]', space=smem, size = 0x4, offset = 0x4, fixed_abs, tag = 'smem constant byte address 0x4 - core index']
  #allocation1 [shape = 'u32[144,128]{1,0:T(1,128)}', space=vmem, size = 0x12000, scoped, tag = 'internal scratch']
  %s0 = inlined_call_operand.vmem [shape: f32[2,3,16], index: 0, kind: input, shape index: {}]
  %s1 = inlined_call_operand.vmem [shape: f32[2,8,3], index: 1, kind: input, shape index: {}]
  %s2 = inlined_call_operand.vmem [shape: f32[2,4,16], index: 2, kind: input, shape index: {}]
  %s3 = inlined_call_operand.vmem [shape: f32[2,8,8], index: 3, kind: input, shape index: {}]
  %s4 = inlined_call_operand.vmem [shape: f32[32,8], index: 4, kind: input, shape index: {}]
  %s5 = inlined_call_operand.vmem [shape: f32[32,4], index: 5, kind: input, shape index: {}]
  %s6 = inlined_call_operand.vmem [shape: f32[32,1], index: 6, kind: input, shape index: {}]
  %s7 = inlined_call_operand.vmem [shape: f32[32,1], index: 7, kind: input, shape index: {}]
  %s8 = inlined_call_operand.vmem [shape: f32[16,32], index: 8, kind: input, shape index: {}]
  %s9 = inlined_call_operand.vmem [shape: f32[16,1], index: 9, kind: input, shape index: {}]
  %s10 = inlined_call_operand.vmem [shape: f32[16,1], index: 10, kind: input, shape index: {}]
  %s11 = inlined_call_operand.hbm [shape: f32[2,16,16], index: 11, kind: output, shape index: {}]
  %s12 = sld [smem:[#allocation0]]
  $region77: #{tpu_custom_call.1} parent=0
    _
  %s14 = ssub.s32 1, %s12
  %s15 = scalar_select 0, %s14, %s12
  $region1: #{tpu_custom_call.1} parent=0
    #allocation2 [shape = 'u8[16384]{0}', space=vmem, size = 0x4000, scoped, tag = 'output window, operand 0']
    #allocation3 [shape = 's32[2]{0}', space=sflag, size = 0x8, scoped, tag = 'scoped memory for tpu_custom_call.1']
    %16 = vsyncpa [#allocation3], 0
    %s17 = scalar_lea.sflag [#allocation3], 1
    %18 = vsyncpa %s17, 0
    loop: start=0, step=1, limit=4
    $region2: #{tpu_custom_call.1} parent=1 // loop_pre_header
      _
    $region3: #{tpu_custom_call.1} parent=1 // loop_header
      %s20 = sphi 0, %s24
      %p21 = scmp.ge.s32.totalorder %s20, 4
      %s27 = sphi 0, %s39
      %s28 = sphi 0, %s35
      %s29 = sphi 0, %s27
      %s30 = sphi 0, %s28
      %s31 = sphi 0, %s29
      %s32 = sphi 0, %s30
      %s44 = sphi 0, %s46
      %s47 = sphi 0, %s44
      %s48 = sphi 0, %s47
      %s64 = sphi 0, %s48
      %s70 = sphi 0, %s72
      %s73 = sphi 0, %s70
      %s74 = sphi 0, %s73
      %s90 = sphi 0, %s74
      %s98 = sphi 0, %s100
      %s101 = sphi 0, %s98
      %s102 = sphi 0, %s101
      %s118 = sphi 0, %s102
      %s124 = sphi 0, %s126
      %s127 = sphi 0, %s124
      %s128 = sphi 0, %s127
      %s144 = sphi 0, %s128
      %s148 = sphi 0, %s148
      %s150 = sphi 0, %s148
      %s151 = sphi 0, %s150
      %s165 = sphi 0, %s151
      %s169 = sphi 0, %s169
      %s171 = sphi 0, %s169
      %s172 = sphi 0, %s171
      %s186 = sphi 0, %s172
      %s190 = sphi 0, %s190
      %s192 = sphi 0, %s190
      %s193 = sphi 0, %s192
      %s207 = sphi 0, %s193
      %s211 = sphi 0, %s211
      %s213 = sphi 0, %s211
      %s214 = sphi 0, %s213
      %s228 = sphi 0, %s214
      %s232 = sphi 0, %s232
      %s234 = sphi 0, %s232
      %s235 = sphi 0, %s234
      %s249 = sphi 0, %s235
      %s253 = sphi 0, %s253
      %s255 = sphi 0, %s253
      %s256 = sphi 0, %s255
      %s270 = sphi 0, %s256
      %s274 = sphi 0, %s274
      %s276 = sphi 0, %s274
      %s277 = sphi 0, %s276
      %s291 = sphi 0, %s277
      %s299 = sphi 0, %s301
      %s302 = sphi 0, %s299
      %s303 = sphi 0, %s302
      %s319 = sphi 0, %s303
    $region4: #{tpu_custom_call.1} parent=1 // loop_header_branch
      %23 = sbr.rel (%p21) target = $region8
    $region5: #{tpu_custom_call.1} parent=1 // loop_body
      %s25 = ssub.s32 %s20, 1
      %s26 = ssub.s32 %s20, 2
      %s33 = sadd.s32 1, %s28
      %p34 = scmp.ge.s32.totalorder %s33, 1
      %s35 = scalar_select %p34, 0, %s33
      %s36 = sadd.s32 1, %s27
      %s37 = scalar_select %p34, %s36, %s27
      %p38 = scmp.ge.s32.totalorder %s37, 2
      %s39 = scalar_select %p38, 0, %s37
      %s40 = ssub.s32 %s27, %s39
      %s41 = ssub.s32 %s28, %s35
      %s42 = sor.u32 %s40, %s41
      %p43 = scmp.eq.s32.totalorder %s42, 0
      %s45 = sadd.s32 %s44, 1
      %s46 = scalar_select %p43, %s44, %s45
      %p49 = pneg %p43
      %p50 = scmp.eq.s32.totalorder %s20, 1
      %p51 = por %p49, %p50
      %p52 = scmp.ne.s32.totalorder %s44, %s47
      %p53 = scmp.eq.s32.totalorder %s20, 0
      %p54 = por %p52, %p53
      %p55 = scmp.ne.s32.totalorder %s44, %s47
      %p56 = scmp.eq.s32.totalorder %s25, 1
      %p57 = por %p55, %p56
      %p58 = scmp.ne.s32.totalorder %s47, %s48
      %p59 = scmp.eq.s32.totalorder %s25, 0
      %p60 = por %p58, %p59
      %p61 = scmp.ne.s32.totalorder %s47, %s48
      %p62 = scmp.eq.s32.totalorder %s26, 1
      %p63 = por %p61, %p62
      %p65 = scmp.ne.s32.totalorder %s48, %s64
      %p66 = scmp.eq.s32.totalorder %s26, 0
      %p67 = por %p65, %p66
      %s68 = ssub.s32 %s27, %s39
      %p69 = scmp.eq.s32.totalorder %s68, 0
      %s71 = sadd.s32 %s70, 1
      %s72 = scalar_select %p69, %s70, %s71
      %p75 = pneg %p69
      %p76 = scmp.eq.s32.totalorder %s20, 1
      %p77 = por %p75, %p76
      %p78 = scmp.ne.s32.totalorder %s70, %s73
      %p79 = scmp.eq.s32.totalorder %s20, 0
      %p80 = por %p78, %p79
      %p81 = scmp.ne.s32.totalorder %s70, %s73
      %p82 = scmp.eq.s32.totalorder %s25, 1
      %p83 = por %p81, %p82
      %p84 = scmp.ne.s32.totalorder %s73, %s74
      %p85 = scmp.eq.s32.totalorder %s25, 0
      %p86 = por %p84, %p85
      %p87 = scmp.ne.s32.totalorder %s73, %s74
      %p88 = scmp.eq.s32.totalorder %s26, 1
      %p89 = por %p87, %p88
      %p91 = scmp.ne.s32.totalorder %s74, %s90
      %p92 = scmp.eq.s32.totalorder %s26, 0
      %p93 = por %p91, %p92
      %s94 = ssub.s32 %s27, %s39
      %s95 = ssub.s32 %s28, %s35
      %s96 = sor.u32 %s94, %s95
      %p97 = scmp.eq.s32.totalorder %s96, 0
      %s99 = sadd.s32 %s98, 1
      %s100 = scalar_select %p97, %s98, %s99
      %p103 = pneg %p97
      %p104 = scmp.eq.s32.totalorder %s20, 1
      %p105 = por %p103, %p104
      %p106 = scmp.ne.s32.totalorder %s98, %s101
      %p107 = scmp.eq.s32.totalorder %s20, 0
      %p108 = por %p106, %p107
      %p109 = scmp.ne.s32.totalorder %s98, %s101
      %p110 = scmp.eq.s32.totalorder %s25, 1
      %p111 = por %p109, %p110
      %p112 = scmp.ne.s32.totalorder %s101, %s102
      %p113 = scmp.eq.s32.totalorder %s25, 0
      %p114 = por %p112, %p113
      %p115 = scmp.ne.s32.totalorder %s101, %s102
      %p116 = scmp.eq.s32.totalorder %s26, 1
      %p117 = por %p115, %p116
      %p119 = scmp.ne.s32.totalorder %s102, %s118
      %p120 = scmp.eq.s32.totalorder %s26, 0
      %p121 = por %p119, %p120
      %s122 = ssub.s32 %s27, %s39
      %p123 = scmp.eq.s32.totalorder %s122, 0
      %s125 = sadd.s32 %s124, 1
      %s126 = scalar_select %p123, %s124, %s125
      %p129 = pneg %p123
      %p130 = scmp.eq.s32.totalorder %s20, 1
      %p131 = por %p129, %p130
      %p132 = scmp.ne.s32.totalorder %s124, %s127
      %p133 = scmp.eq.s32.totalorder %s20, 0
      %p134 = por %p132, %p133
      %p135 = scmp.ne.s32.totalorder %s124, %s127
      %p136 = scmp.eq.s32.totalorder %s25, 1
      %p137 = por %p135, %p136
      %p138 = scmp.ne.s32.totalorder %s127, %s128
      %p139 = scmp.eq.s32.totalorder %s25, 0
      %p140 = por %p138, %p139
      %p141 = scmp.ne.s32.totalorder %s127, %s128
      %p142 = scmp.eq.s32.totalorder %s26, 1
      %p143 = por %p141, %p142
      %p145 = scmp.ne.s32.totalorder %s128, %s144
      %p146 = scmp.eq.s32.totalorder %s26, 0
      %p147 = por %p145, %p146
      %s149 = sadd.s32 %s148, 1
      %p152 = scmp.eq.s32.totalorder %s20, 1
      %p153 = scmp.ne.s32.totalorder %s148, %s150
      %p154 = scmp.eq.s32.totalorder %s20, 0
      %p155 = por %p153, %p154
      %p156 = scmp.ne.s32.totalorder %s148, %s150
      %p157 = scmp.eq.s32.totalorder %s25, 1
      %p158 = por %p156, %p157
      %p159 = scmp.ne.s32.totalorder %s150, %s151
      %p160 = scmp.eq.s32.totalorder %s25, 0
      %p161 = por %p159, %p160
      %p162 = scmp.ne.s32.totalorder %s150, %s151
      %p163 = scmp.eq.s32.totalorder %s26, 1
      %p164 = por %p162, %p163
      %p166 = scmp.ne.s32.totalorder %s151, %s165
      %p167 = scmp.eq.s32.totalorder %s26, 0
      %p168 = por %p166, %p167
      %s170 = sadd.s32 %s169, 1
      %p173 = scmp.eq.s32.totalorder %s20, 1
      %p174 = scmp.ne.s32.totalorder %s169, %s171
      %p175 = scmp.eq.s32.totalorder %s20, 0
      %p176 = por %p174, %p175
      %p177 = scmp.ne.s32.totalorder %s169, %s171
      %p178 = scmp.eq.s32.totalorder %s25, 1
      %p179 = por %p177, %p178
      %p180 = scmp.ne.s32.totalorder %s171, %s172
      %p181 = scmp.eq.s32.totalorder %s25, 0
      %p182 = por %p180, %p181
      %p183 = scmp.ne.s32.totalorder %s171, %s172
      %p184 = scmp.eq.s32.totalorder %s26, 1
      %p185 = por %p183, %p184
      %p187 = scmp.ne.s32.totalorder %s172, %s186
      %p188 = scmp.eq.s32.totalorder %s26, 0
      %p189 = por %p187, %p188
      %s191 = sadd.s32 %s190, 1
      %p194 = scmp.eq.s32.totalorder %s20, 1
      %p195 = scmp.ne.s32.totalorder %s190, %s192
      %p196 = scmp.eq.s32.totalorder %s20, 0
      %p197 = por %p195, %p196
      %p198 = scmp.ne.s32.totalorder %s190, %s192
      %p199 = scmp.eq.s32.totalorder %s25, 1
      %p200 = por %p198, %p199
      %p201 = scmp.ne.s32.totalorder %s192, %s193
      %p202 = scmp.eq.s32.totalorder %s25, 0
      %p203 = por %p201, %p202
      %p204 = scmp.ne.s32.totalorder %s192, %s193
      %p205 = scmp.eq.s32.totalorder %s26, 1
      %p206 = por %p204, %p205
      %p208 = scmp.ne.s32.totalorder %s193, %s207
      %p209 = scmp.eq.s32.totalorder %s26, 0
      %p210 = por %p208, %p209
      %s212 = sadd.s32 %s211, 1
      %p215 = scmp.eq.s32.totalorder %s20, 1
      %p216 = scmp.ne.s32.totalorder %s211, %s213
      %p217 = scmp.eq.s32.totalorder %s20, 0
      %p218 = por %p216, %p217
      %p219 = scmp.ne.s32.totalorder %s211, %s213
      %p220 = scmp.eq.s32.totalorder %s25, 1
      %p221 = por %p219, %p220
      %p222 = scmp.ne.s32.totalorder %s213, %s214
      %p223 = scmp.eq.s32.totalorder %s25, 0
      %p224 = por %p222, %p223
      %p225 = scmp.ne.s32.totalorder %s213, %s214
      %p226 = scmp.eq.s32.totalorder %s26, 1
      %p227 = por %p225, %p226
      %p229 = scmp.ne.s32.totalorder %s214, %s228
      %p230 = scmp.eq.s32.totalorder %s26, 0
      %p231 = por %p229, %p230
      %s233 = sadd.s32 %s232, 1
      %p236 = scmp.eq.s32.totalorder %s20, 1
      %p237 = scmp.ne.s32.totalorder %s232, %s234
      %p238 = scmp.eq.s32.totalorder %s20, 0
      %p239 = por %p237, %p238
      %p240 = scmp.ne.s32.totalorder %s232, %s234
      %p241 = scmp.eq.s32.totalorder %s25, 1
      %p242 = por %p240, %p241
      %p243 = scmp.ne.s32.totalorder %s234, %s235
      %p244 = scmp.eq.s32.totalorder %s25, 0
      %p245 = por %p243, %p244
      %p246 = scmp.ne.s32.totalorder %s234, %s235
      %p247 = scmp.eq.s32.totalorder %s26, 1
      %p248 = por %p246, %p247
      %p250 = scmp.ne.s32.totalorder %s235, %s249
      %p251 = scmp.eq.s32.totalorder %s26, 0
      %p252 = por %p250, %p251
      %s254 = sadd.s32 %s253, 1
      %p257 = scmp.eq.s32.totalorder %s20, 1
      %p258 = scmp.ne.s32.totalorder %s253, %s255
      %p259 = scmp.eq.s32.totalorder %s20, 0
      %p260 = por %p258, %p259
      %p261 = scmp.ne.s32.totalorder %s253, %s255
      %p262 = scmp.eq.s32.totalorder %s25, 1
      %p263 = por %p261, %p262
      %p264 = scmp.ne.s32.totalorder %s255, %s256
      %p265 = scmp.eq.s32.totalorder %s25, 0
      %p266 = por %p264, %p265
      %p267 = scmp.ne.s32.totalorder %s255, %s256
      %p268 = scmp.eq.s32.totalorder %s26, 1
      %p269 = por %p267, %p268
      %p271 = scmp.ne.s32.totalorder %s256, %s270
      %p272 = scmp.eq.s32.totalorder %s26, 0
      %p273 = por %p271, %p272
      %s275 = sadd.s32 %s274, 1
      %p278 = scmp.eq.s32.totalorder %s20, 1
      %p279 = scmp.ne.s32.totalorder %s274, %s276
      %p280 = scmp.eq.s32.totalorder %s20, 0
      %p281 = por %p279, %p280
      %p282 = scmp.ne.s32.totalorder %s274, %s276
      %p283 = scmp.eq.s32.totalorder %s25, 1
      %p284 = por %p282, %p283
      %p285 = scmp.ne.s32.totalorder %s276, %s277
      %p286 = scmp.eq.s32.totalorder %s25, 0
      %p287 = por %p285, %p286
      %p288 = scmp.ne.s32.totalorder %s276, %s277
      %p289 = scmp.eq.s32.totalorder %s26, 1
      %p290 = por %p288, %p289
      %p292 = scmp.ne.s32.totalorder %s277, %s291
      %p293 = scmp.eq.s32.totalorder %s26, 0
      %p294 = por %p292, %p293
      %s295 = ssub.s32 %s27, %s39
      %s296 = ssub.s32 %s28, %s35
      %s297 = sor.u32 %s295, %s296
      %p298 = scmp.eq.s32.totalorder %s297, 0
      %s300 = sadd.s32 %s299, 1
      %s301 = scalar_select %p298, %s299, %s300
      %p304 = pneg %p298
      %p305 = scmp.eq.s32.totalorder %s20, 1
      %p306 = por %p304, %p305
      %p307 = scmp.ne.s32.totalorder %s299, %s302
      %p308 = scmp.eq.s32.totalorder %s20, 0
      %p309 = por %p307, %p308
      %p310 = scmp.ne.s32.totalorder %s299, %s302
      %p311 = scmp.eq.s32.totalorder %s25, 1
      %p312 = por %p310, %p311
      %p313 = scmp.ne.s32.totalorder %s302, %s303
      %p314 = scmp.eq.s32.totalorder %s25, 0
      %p315 = por %p313, %p314
      %p316 = scmp.ne.s32.totalorder %s302, %s303
      %p317 = scmp.eq.s32.totalorder %s26, 1
      %p318 = por %p316, %p317
      %p320 = scmp.ne.s32.totalorder %s303, %s319
      %p321 = scmp.eq.s32.totalorder %s26, 0
      %p322 = por %p320, %p321
      %p323 = scmp.le.s32.totalorder 1, %s20
      %p324 = scmp.lt.s32.totalorder %s20, 3
      %p325 = pnand %p323, %p324
      %p326 = pneg %p325
      // Predicated region
      $region9: #{tpu_custom_call.1} parent=5 // pred_check
        _
      $region10: #{tpu_custom_call.1} parent=5 // pred_check_branch
        %328 = sbr.rel (%p325) target = $region12
      $region11: #{tpu_custom_call.1} parent=5 // pred_region
        %s329 = ssub.s32 %s20, 1
        // Predicated region
        $region13: #{tpu_custom_call.1} parent=11 // pred_check
          %p330 = pneg %p161
        $region14: #{tpu_custom_call.1} parent=11 // pred_check_branch
          %332 = sbr.rel (%p330) target = $region16
        $region15: #{tpu_custom_call.1} parent=11 // pred_region
          _
        $region16: #{tpu_custom_call.1} parent=11 // pred_fallthru
          _
        // Predicated region
        $region17: #{tpu_custom_call.1} parent=11 // pred_check
          %p333 = pneg %p182
        $region18: #{tpu_custom_call.1} parent=11 // pred_check_branch
          %335 = sbr.rel (%p333) target = $region20
        $region19: #{tpu_custom_call.1} parent=11 // pred_region
          _
        $region20: #{tpu_custom_call.1} parent=11 // pred_fallthru
          _
        // Predicated region
        $region21: #{tpu_custom_call.1} parent=11 // pred_check
          %p336 = pneg %p203
        $region22: #{tpu_custom_call.1} parent=11 // pred_check_branch
          %338 = sbr.rel (%p336) target = $region24
        $region23: #{tpu_custom_call.1} parent=11 // pred_region
          _
        $region24: #{tpu_custom_call.1} parent=11 // pred_fallthru
          _
        // Predicated region
        $region25: #{tpu_custom_call.1} parent=11 // pred_check
          %p339 = pneg %p224
        $region26: #{tpu_custom_call.1} parent=11 // pred_check_branch
          %341 = sbr.rel (%p339) target = $region28
        $region27: #{tpu_custom_call.1} parent=11 // pred_region
          _
        $region28: #{tpu_custom_call.1} parent=11 // pred_fallthru
          _
        // Predicated region
        $region29: #{tpu_custom_call.1} parent=11 // pred_check
          %p342 = pneg %p245
        $region30: #{tpu_custom_call.1} parent=11 // pred_check_branch
          %344 = sbr.rel (%p342) target = $region32
        $region31: #{tpu_custom_call.1} parent=11 // pred_region
          _
        $region32: #{tpu_custom_call.1} parent=11 // pred_fallthru
          _
        // Predicated region
        $region33: #{tpu_custom_call.1} parent=11 // pred_check
          %p345 = pneg %p266
        $region34: #{tpu_custom_call.1} parent=11 // pred_check_branch
          %347 = sbr.rel (%p345) target = $region36
        $region35: #{tpu_custom_call.1} parent=11 // pred_region
          _
        $region36: #{tpu_custom_call.1} parent=11 // pred_fallthru
          _
        // Predicated region
        $region37: #{tpu_custom_call.1} parent=11 // pred_check
          %p348 = pneg %p287
        $region38: #{tpu_custom_call.1} parent=11 // pred_check_branch
          %350 = sbr.rel (%p348) target = $region40
        $region39: #{tpu_custom_call.1} parent=11 // pred_region
          _
        $region40: #{tpu_custom_call.1} parent=11 // pred_fallthru
          _
      $region12: #{tpu_custom_call.1} parent=5 // pred_fallthru
        _
      %p351 = scmp.lt.s32.totalorder %s20, 2
      // Predicated region
      $region41: #{tpu_custom_call.1} parent=5 // pred_check
        %p352 = pneg %p351
      $region42: #{tpu_custom_call.1} parent=5 // pred_check_branch
        %354 = sbr.rel (%p352) target = $region44
      $region43: #{tpu_custom_call.1} parent=5 // pred_region
        // Predicated region
        $region45: #{tpu_custom_call.1} parent=43 // pred_check
          %p355 = pneg %p54
        $region46: #{tpu_custom_call.1} parent=43 // pred_check_branch
          %357 = sbr.rel (%p355) target = $region48
        $region47: #{tpu_custom_call.1} parent=43 // pred_region
          %p358 = scmp.lt.s32.totalorder %s27, 1
          %s359 = scalar_select %p358, %s27, 1
          %p360 = scmp.lt.s32.totalorder %s28, 0
          %s361 = scalar_select %p360, %s28, 0
          %s362 = sadd.s32 %s361, %s359
          %s363 = smul.addr %s362, 4
          %s364 = scalar_lea.vmem %s0, %s363
        $region48: #{tpu_custom_call.1} parent=43 // pred_fallthru
          _
        // Predicated region
        $region49: #{tpu_custom_call.1} parent=43 // pred_check
          %p365 = pneg %p80
        $region50: #{tpu_custom_call.1} parent=43 // pred_check_branch
          %367 = sbr.rel (%p365) target = $region52
        $region51: #{tpu_custom_call.1} parent=43 // pred_region
          %p368 = scmp.lt.s32.totalorder %s27, 1
          %s369 = scalar_select %p368, %s27, 1
          %s370 = smul.addr %s369, 8
          %s371 = scalar_lea.vmem %s1, %s370
        $region52: #{tpu_custom_call.1} parent=43 // pred_fallthru
          _
        // Predicated region
        $region53: #{tpu_custom_call.1} parent=43 // pred_check
          %p372 = pneg %p108
        $region54: #{tpu_custom_call.1} parent=43 // pred_check_branch
          %374 = sbr.rel (%p372) target = $region56
        $region55: #{tpu_custom_call.1} parent=43 // pred_region
          %p375 = scmp.lt.s32.totalorder %s27, 1
          %s376 = scalar_select %p375, %s27, 1
          %p377 = scmp.lt.s32.totalorder %s28, 0
          %s378 = scalar_select %p377, %s28, 0
          %s379 = sadd.s32 %s378, %s376
          %s380 = smul.addr %s379, 4
          %s381 = scalar_lea.vmem %s2, %s380
        $region56: #{tpu_custom_call.1} parent=43 // pred_fallthru
          _
        // Predicated region
        $region57: #{tpu_custom_call.1} parent=43 // pred_check
          %p382 = pneg %p134
        $region58: #{tpu_custom_call.1} parent=43 // pred_check_branch
          %384 = sbr.rel (%p382) target = $region60
        $region59: #{tpu_custom_call.1} parent=43 // pred_region
          %p385 = scmp.lt.s32.totalorder %s27, 1
          %s386 = scalar_select %p385, %s27, 1
          %s387 = smul.addr %s386, 8
          %s388 = scalar_lea.vmem %s3, %s387
        $region60: #{tpu_custom_call.1} parent=43 // pred_fallthru
          _
      $region44: #{tpu_custom_call.1} parent=5 // pred_fallthru
        _
      %p389 = scmp.le.s32.totalorder 1, %s20
      %p390 = scmp.lt.s32.totalorder %s20, 3
      %p391 = pnand %p389, %p390
      %p392 = pneg %p391
      // Predicated region
      $region61: #{tpu_custom_call.1} parent=5 // pred_check
        _
      $region62: #{tpu_custom_call.1} parent=5 // pred_check_branch
        %394 = sbr.rel (%p391) target = $region64
      $region63: #{tpu_custom_call.1} parent=5 // pred_region
        %s395 = ssub.s32 %s20, 1
        %p396 = scmp.lt.s32.totalorder %s29, 1
        %s397 = scalar_select %p396, %s29, 1
        %p398 = scmp.lt.s32.totalorder %s30, 0
        %s399 = scalar_select %p398, %s30, 0
        %s400 = sadd.s32 %s399, %s397
        %s401 = smul.addr %s400, 4
        %s402 = scalar_lea.vmem %s0, %s401
        %p403 = pneg %p60
        %p404 = pneg %p57
        %p405 = scmp.lt.s32.totalorder %s29, 1
        %s406 = scalar_select %p405, %s29, 1
        %s407 = smul.addr %s406, 8
        %s408 = scalar_lea.vmem %s1, %s407
        %p409 = pneg %p86
        %p410 = pneg %p83
        %p411 = scmp.lt.s32.totalorder %s29, 1
        %s412 = scalar_select %p411, %s29, 1
        %p413 = scmp.lt.s32.totalorder %s30, 0
        %s414 = scalar_select %p413, %s30, 0
        %s415 = sadd.s32 %s414, %s412
        %s416 = smul.addr %s415, 4
        %s417 = scalar_lea.vmem %s2, %s416
        %p418 = pneg %p114
        %p419 = pneg %p111
        %p420 = scmp.lt.s32.totalorder %s29, 1
        %s421 = scalar_select %p420, %s29, 1
        %s422 = smul.addr %s421, 8
        %s423 = scalar_lea.vmem %s3, %s422
        %p424 = pneg %p140
        %p425 = pneg %p137
        %p426 = pneg %p161
        %p427 = pneg %p158
        %p428 = pneg %p182
        %p429 = pneg %p179
        %p430 = pneg %p203
        %p431 = pneg %p200
        %p432 = pneg %p224
        %p433 = pneg %p221
        %p434 = pneg %p245
        %p435 = pneg %p242
        %p436 = pneg %p266
        %p437 = pneg %p263
        %p438 = pneg %p287
        %p439 = pneg %p284
        %p440 = pneg %p315
        %p441 = pneg %p312
        %s442 = sand.u32 %s302, 1
        %s443 = scalar_lea.sflag [#allocation3], %s442
        %s444 = sand.u32 %s302, 1
        %s445 = smul.addr %s444, 16
        %s446 = scalar_lea.vmem [#allocation2], %s445
        %p447 = scmp.lt.s32.totalorder %s29, 1
        %s448 = scalar_select %p447, %s29, 1
        %p449 = scmp.lt.s32.totalorder %s30, 0
        %s450 = scalar_select %p449, %s30, 0
        %s451 = sadd.s32 %s450, %s448
        %s452 = smul.addr %s451, 4
        %s453 = scalar_lea.vmem %s0, %s452
        %p454 = scmp.lt.s32.totalorder %s29, 1
        %s455 = scalar_select %p454, %s29, 1
        %s456 = smul.addr %s455, 8
        %s457 = scalar_lea.vmem %s1, %s456
        %p458 = scmp.lt.s32.totalorder %s29, 1
        %s459 = scalar_select %p458, %s29, 1
        %p460 = scmp.lt.s32.totalorder %s30, 0
        %s461 = scalar_select %p460, %s30, 0
        %s462 = sadd.s32 %s461, %s459
        %s463 = smul.addr %s462, 4
        %s464 = scalar_lea.vmem %s2, %s463
        %p465 = scmp.lt.s32.totalorder %s29, 1
        %s466 = scalar_select %p465, %s29, 1
        %s467 = smul.addr %s466, 8
        %s468 = scalar_lea.vmem %s3, %s467
        %v469 = vld [vmem:[%s453] sm:$0x7]
        %v470 = vld [vmem:[%s464] sm:$0xf]
        %v471 = vld [vmem:[%s457] sm:$0xff]
        %473 = vset.pattern.permute.xlu0 0
        %474 = vperm.xlu0 %473, %v471
        %v475 = vpop.permute.xlu0 %474
        %v477 = vlaneseq
        %v478 = vshrl.u32 %v477, 7
        %v479 = vsub.s32 0, %v478
        %v480 = vrot.slane %v469, %v479
        %v481 = vsub.f32 %v475, %v480
        %v482 = vmul.f32 %v481, %v481
        %v483 = vadd.f32 %v482, 0.0
        %484 = vset.pattern.permute.xlu0 1
        %485 = vperm.xlu0 %484, %v471
        %v486 = vpop.permute.xlu0 %485
        %v488 = vlaneseq
        %v489 = vshrl.u32 %v488, 7
        %v490 = vsub.s32 1, %v489
        %v491 = vrot.slane %v469, %v490
        %v492 = vsub.f32 %v486, %v491
        %v493 = vmul.f32 %v492, %v492
        %v494 = vadd.f32 %v483, %v493
        %495 = vset.pattern.permute.xlu0 2
        %496 = vperm.xlu0 %495, %v471
        %v497 = vpop.permute.xlu0 %496
        %v499 = vlaneseq
        %v500 = vshrl.u32 %v499, 7
        %v501 = vsub.s32 2, %v500
        %v502 = vrot.slane %v469, %v501
        %v503 = vsub.f32 %v497, %v502
        %v504 = vmul.f32 %v503, %v503
        %v505 = vadd.f32 %v494, %v504
        %v506 = vlaneseq
        %v507 = vshrl.u32 %v506, 7
        %v509 = vrot.slane %v505, 5
        %vm511 = vcmask 1042432
        %v512 = vsel %vm511, 1e+30, %v509
        %v513 = vrot.slane %v507, 5
        %v514 = vsel %vm511, 8, %v513
        %vm515 = vcmask 130048
        %v516 = vsel %vm515, %v512, inf
        %vm517 = vcmask 124928
        %v518 = vsel %vm517, %v509, inf
        %v519 = vmin.f32 %v516, %v518
        %v520 = vrot.slane %v519, 4
        %v521 = vmin.f32 %v519, %v520
        %v522 = vrot.slane %v521, 2
        %v523 = vmin.f32 %v521, %v522
        %v524 = vrot.slane %v523, 1
        %v525 = vmin.f32 %v523, %v524
        %vm526 = vcmp.eq.f32.partialorder %v512, %v525
        %vm527 = vcmp.eq.f32.partialorder %v509, %v525
        %v528 = vsel %vm526, %v514, 1073741824
        %v529 = vsel %vm527, %v513, 1073741824
        %v530 = vsel %vm515, %v528, 2147483647
        %v531 = vsel %vm517, %v529, 2147483647
        %vm532 = vcmp.lt.s32.totalorder %v530, %v531
        %v533 = vsel %vm532, %v530, %v531
        %v534 = vrot.slane %v533, 4
        %vm535 = vcmp.lt.s32.totalorder %v533, %v534
        %v536 = vsel %vm535, %v533, %v534
        %v537 = vrot.slane %v536, 2
        %vm538 = vcmp.lt.s32.totalorder %v536, %v537
        %v539 = vsel %vm538, %v536, %v537
        %v540 = vrot.slane %v539, 1
        %vm541 = vcmp.lt.s32.totalorder %v539, %v540
        %v542 = vsel %vm541, %v539, %v540
        %vm543 = vcmp.eq.s32.totalorder %v514, %v542
        %vm544 = vcmp.eq.s32.totalorder %v513, %v542
        %v545 = vsel %vm543, 2e+30, %v512
        %v546 = vsel %vm544, 2e+30, %v509
        %v547 = vsel %vm515, %v545, inf
        %v548 = vsel %vm517, %v546, inf
        %v549 = vmin.f32 %v547, %v548
        %v550 = vrot.slane %v549, 4
        %v551 = vmin.f32 %v549, %v550
        %v552 = vrot.slane %v551, 2
        %v553 = vmin.f32 %v551, %v552
        %v554 = vrot.slane %v553, 1
        %v555 = vmin.f32 %v553, %v554
        %vm556 = vcmp.eq.f32.partialorder %v545, %v555
        %vm557 = vcmp.eq.f32.partialorder %v546, %v555
        %v558 = vsel %vm556, %v514, 1073741824
        %v559 = vsel %vm557, %v513, 1073741824
        %v560 = vsel %vm515, %v558, 2147483647
        %v561 = vsel %vm517, %v559, 2147483647
        %vm562 = vcmp.lt.s32.totalorder %v560, %v561
        %v563 = vsel %vm562, %v560, %v561
        %v564 = vrot.slane %v563, 4
        %vm565 = vcmp.lt.s32.totalorder %v563, %v564
        %v566 = vsel %vm565, %v563, %v564
        %v567 = vrot.slane %v566, 2
        %vm568 = vcmp.lt.s32.totalorder %v566, %v567
        %v569 = vsel %vm568, %v566, %v567
        %v570 = vrot.slane %v569, 1
        %vm571 = vcmp.lt.s32.totalorder %v569, %v570
        %v572 = vsel %vm571, %v569, %v570
        %vm573 = vcmp.eq.s32.totalorder %v514, %v572
        %vm574 = vcmp.eq.s32.totalorder %v513, %v572
        %v575 = vsel %vm573, 2e+30, %v545
        %v576 = vsel %vm574, 2e+30, %v546
        %v577 = vsel %vm515, %v575, inf
        %v578 = vsel %vm517, %v576, inf
        %v579 = vmin.f32 %v577, %v578
        %v580 = vrot.slane %v579, 4
        %v581 = vmin.f32 %v579, %v580
        %v582 = vrot.slane %v581, 2
        %v583 = vmin.f32 %v581, %v582
        %v584 = vrot.slane %v583, 1
        %v585 = vmin.f32 %v583, %v584
        %vm586 = vcmp.eq.f32.partialorder %v575, %v585
        %vm587 = vcmp.eq.f32.partialorder %v576, %v585
        %v588 = vsel %vm586, %v514, 1073741824
        %v589 = vsel %vm587, %v513, 1073741824
        %v590 = vsel %vm515, %v588, 2147483647
        %v591 = vsel %vm517, %v589, 2147483647
        %vm592 = vcmp.lt.s32.totalorder %v590, %v591
        %v593 = vsel %vm592, %v590, %v591
        %v594 = vrot.slane %v593, 4
        %vm595 = vcmp.lt.s32.totalorder %v593, %v594
        %v596 = vsel %vm595, %v593, %v594
        %v597 = vrot.slane %v596, 2
        %vm598 = vcmp.lt.s32.totalorder %v596, %v597
        %v599 = vsel %vm598, %v596, %v597
        %v600 = vrot.slane %v599, 1
        %vm601 = vcmp.lt.s32.totalorder %v599, %v600
        %v602 = vsel %vm601, %v599, %v600
        %vm603 = vcmask 1040384
        %v604 = vsel %vm603, %v525, %v555
        %vm605 = vcmask 1041408
        %v606 = vsel %vm605, %v604, %v585
        %v607 = vsel %vm603, %v542, %v572
        %v608 = vsel %vm605, %v607, %v602
        %v609 = vrsqrt.pop %v606
        %v610 = vmul.f32 %v606, %v609
        %vm611 = vcmp.eq.f32.partialorder %v606, inf
        %v612 = vsel %vm611, %v606, %v610
        %vm613 = vcmp.eq.f32.partialorder %v606, 0.0
        %v614 = vand.u32 %v606, 2147483648
        %v615 = vsel %vm613, %v614, %v612
        %v616 = vadd.f32 %v615, 1e-08
        %v617 = vrcp.pop %v616
        %v618 = vmul.f32 1.0, %v617
        %v619 = vsel %vm517, %v618, 0.0
        %v620 = vrot.slane %v619, 4
        %v621 = vadd.f32 %v619, %v620
        %v622 = vrot.slane %v621, 2
        %v623 = vadd.f32 %v621, %v622
        %v624 = vrot.slane %v623, 1
        %v625 = vadd.f32 %v623, %v624
        %v626 = vlaneseq
        %v627 = vshrl.u32 %v626, 7
        %v628 = vsub.s32 0, %v627
        %v629 = vrot.slane %v608, %v628
        %vm630 = vcmp.eq.s32.totalorder %v507, %v629
        %v631 = vlaneseq
        %v632 = vshrl.u32 %v631, 7
        %v633 = vsub.s32 0, %v632
        %v634 = vrot.slane %v618, %v633
        %v635 = vsel %vm630, %v634, 0.0
        %v636 = vadd.f32 %v635, 0.0
        %v637 = vlaneseq
        %v638 = vshrl.u32 %v637, 7
        %v639 = vsub.s32 1, %v638
        %v640 = vrot.slane %v608, %v639
        %vm641 = vcmp.eq.s32.totalorder %v507, %v640
        %v642 = vlaneseq
        %v643 = vshrl.u32 %v642, 7
        %v644 = vsub.s32 1, %v643
        %v645 = vrot.slane %v618, %v644
        %v646 = vsel %vm641, %v645, 0.0
        %v647 = vadd.f32 %v636, %v646
        %v648 = vlaneseq
        %v649 = vshrl.u32 %v648, 7
        %v650 = vsub.s32 2, %v649
        %v651 = vrot.slane %v608, %v650
        %vm652 = vcmp.eq.s32.totalorder %v507, %v651
        %v653 = vlaneseq
        %v654 = vshrl.u32 %v653, 7
        %v655 = vsub.s32 2, %v654
        %v656 = vrot.slane %v618, %v655
        %v657 = vsel %vm652, %v656, 0.0
        %v658 = vadd.f32 %v647, %v657
        %v659 = vld [vmem:[%s468] sm:$0xff]
        %vm660 = vcmask 64512
        %v662 = vsel %vm660, %v659, 0
        %664 = vmatprep.subr.mxu0 0.0
        %665 = vmatpush1.msra.mxu0 0.0
        %666 = vmatprep.subr.mxu0 0.0
        %667 = vmatpush1.msra.mxu0 0.0
        %668 = vmatprep.subr.mxu0 0.0
        %669 = vmatpush1.msra.mxu0 0.0
        %670 = vmatprep.subr.mxu0 0.0
        %671 = vmatpush1.msra.mxu0 0.0
        %672 = vmatprep.subr.mxu0 0.0
        %673 = vmatpush1.msra.mxu0 0.0
        %674 = vmatprep.subr.mxu0 0.0
        %675 = vmatpush1.msra.mxu0 0.0
        %676 = vmatprep.subr.mxu0 0.0
        %677 = vmatpush1.msra.mxu0 0.0
        %678 = vmatprep.subr.mxu0 0.0
        %679 = vmatpush1.msra.mxu0 0.0
        %680 = vmatprep.subr.mxu0 0.0
        %681 = vmatpush1.msra.mxu0 0.0
        %682 = vmatprep.subr.mxu0 0.0
        %683 = vmatpush1.msra.mxu0 0.0
        %684 = vmatprep.subr.mxu0 0.0
        %685 = vmatpush1.msra.mxu0 0.0
        %686 = vmatprep.subr.mxu0 0.0
        %687 = vmatpush1.msra.mxu0 0.0
        %688 = vmatprep.subr.mxu0 0.0
        %689 = vmatpush1.msra.mxu0 0.0
        %690 = vmatprep.subr.mxu0 0.0
        %691 = vmatpush1.msra.mxu0 0.0
        %692 = vmatprep.subr.mxu0 0.0
        %693 = vmatpush1.msra.mxu0 0.0
        %694 = vmatprep.subr.mxu0 0.0
        %695 = vmatpush1.msra.mxu0 %v658
        %696 = vmatprep.subr.mxu0 0.0
        %697 = vmatpush2.msra.mxu0 0.0
        %698 = vmatprep.subr.mxu0 0.0
        %699 = vmatpush2.msra.mxu0 0.0
        %700 = vmatprep.subr.mxu0 0.0
        %701 = vmatpush2.msra.mxu0 0.0
        %702 = vmatprep.subr.mxu0 0.0
        %703 = vmatpush2.msra.mxu0 0.0
        %704 = vmatprep.subr.mxu0 0.0
        %705 = vmatpush2.msra.mxu0 0.0
        %706 = vmatprep.subr.mxu0 0.0
        %707 = vmatpush2.msra.mxu0 0.0
        %708 = vmatprep.subr.mxu0 0.0
        %709 = vmatpush2.msra.mxu0 0.0
        %710 = vmatprep.subr.mxu0 0.0
        %711 = vmatpush2.msra.mxu0 0.0
        %712 = vmatprep.subr.mxu0 0.0
        %713 = vmatpush2.msra.mxu0 0.0
        %714 = vmatprep.subr.mxu0 0.0
        %715 = vmatpush2.msra.mxu0 0.0
        %716 = vmatprep.subr.mxu0 0.0
        %717 = vmatpush2.msra.mxu0 0.0
        %718 = vmatprep.subr.mxu0 0.0
        %719 = vmatpush2.msra.mxu0 0.0
        %720 = vmatprep.subr.mxu0 0.0
        %721 = vmatpush2.msra.mxu0 0.0
        %722 = vmatprep.subr.mxu0 0.0
        %723 = vmatpush2.msra.mxu0 0.0
        %724 = vmatprep.subr.mxu0 0.0
        %725 = vmatpush2.msra.mxu0 0.0
        %726 = vmatprep.subr.mxu0 0.0
        %727 = vmatpush2.msra.mxu0 0.0
        %728 = vmatprep.mubr.f32.mxu0 0.0
        %729 = vmatmul.mubr.f32.gmra.mxu0 %v662
        %v730 = vpop.f32.mrf.mxu0
        %v731 = vadd.f32 0.0, %v730
        %v732 = vpop.f32.mrf.mxu0
        %733 = vdwg.mxu0
        %v734 = vrcp.pop %v625
        %v735 = vmul.f32 1.0, %v734
        %v736 = vmul.f32 %v731, %v735
        %v737 = vld [vmem:[%s4] sm:$0xff]
        %v738 = vld [vmem:[%s4 + $0x8] sm:$0xff]
        %v739 = vld [vmem:[%s4 + $0x10] sm:$0xff]
        %v740 = vld [vmem:[%s4 + $0x18] sm:$0xff]
        %v741 = vld [vmem:[%s5] sm:$0xff]
        %v742 = vld [vmem:[%s5 + $0x8] sm:$0xff]
        %v743 = vld [vmem:[%s5 + $0x10] sm:$0xff]
        %v744 = vld [vmem:[%s5 + $0x18] sm:$0xff]
        %v745 = vld [vmem:[%s6] sm:$0xff]
        %v746 = vld [vmem:[%s6 + $0x8] sm:$0xff]
        %v747 = vld [vmem:[%s6 + $0x10] sm:$0xff]
        %v748 = vld [vmem:[%s6 + $0x18] sm:$0xff]
        %v749 = vld [vmem:[%s7] sm:$0xff]
        %v750 = vld [vmem:[%s7 + $0x8] sm:$0xff]
        %v751 = vld [vmem:[%s7 + $0x10] sm:$0xff]
        %v752 = vld [vmem:[%s7 + $0x18] sm:$0xff]
        %vm753 = vcmask 31744
        %v755 = vsel %vm753, %v741, 0
        %v758 = vsel %vm753, %v742, 0
        %v761 = vsel %vm753, %v743, 0
        %v764 = vsel %vm753, %v744, 0
        %vm766 = vcmask 1043456
        %v768 = vsel %vm766, %v470, 0
        %770 = vmatprep.subr.mxu0 0.0
        %771 = vmatpush1.msra.mxu0 0.0
        %772 = vmatprep.subr.mxu0 0.0
        %773 = vmatpush1.msra.mxu0 0.0
        %774 = vmatprep.subr.mxu0 0.0
        %775 = vmatpush1.msra.mxu0 0.0
        %776 = vmatprep.subr.mxu0 0.0
        %777 = vmatpush1.msra.mxu0 0.0
        %778 = vmatprep.subr.mxu0 0.0
        %779 = vmatpush1.msra.mxu0 0.0
        %780 = vmatprep.subr.mxu0 0.0
        %781 = vmatpush1.msra.mxu0 0.0
        %782 = vmatprep.subr.mxu0 0.0
        %783 = vmatpush1.msra.mxu0 0.0
        %784 = vmatprep.subr.mxu0 0.0
        %785 = vmatpush1.msra.mxu0 0.0
        %786 = vmatprep.subr.mxu0 0.0
        %787 = vmatpush1.msra.mxu0 0.0
        %788 = vmatprep.subr.mxu0 0.0
        %789 = vmatpush1.msra.mxu0 0.0
        %790 = vmatprep.subr.mxu0 0.0
        %791 = vmatpush1.msra.mxu0 0.0
        %792 = vmatprep.subr.mxu0 0.0
        %793 = vmatpush1.msra.mxu0 0.0
        %794 = vmatprep.subr.mxu0 0.0
        %795 = vmatpush1.msra.mxu0 0.0
        %796 = vmatprep.subr.mxu0 0.0
        %797 = vmatpush1.msra.mxu0 0.0
        %798 = vmatprep.subr.mxu0 0.0
        %799 = vmatpush1.msra.mxu0 0.0
        %800 = vmatprep.subr.mxu0 0.0
        %801 = vmatpush1.msra.mxu0 %v768
        %802 = vmatprep.subr.mxu0 0.0
        %803 = vmatpush2.msra.mxu0 0.0
        %804 = vmatprep.subr.mxu0 0.0
        %805 = vmatpush2.msra.mxu0 0.0
        %806 = vmatprep.subr.mxu0 0.0
        %807 = vmatpush2.msra.mxu0 0.0
        %808 = vmatprep.subr.mxu0 0.0
        %809 = vmatpush2.msra.mxu0 0.0
        %810 = vmatprep.subr.mxu0 0.0
        %811 = vmatpush2.msra.mxu0 0.0
        %812 = vmatprep.subr.mxu0 0.0
        %813 = vmatpush2.msra.mxu0 0.0
        %814 = vmatprep.subr.mxu0 0.0
        %815 = vmatpush2.msra.mxu0 0.0
        %816 = vmatprep.subr.mxu0 0.0
        %817 = vmatpush2.msra.mxu0 0.0
        %818 = vmatprep.subr.mxu0 0.0
        %819 = vmatpush2.msra.mxu0 0.0
        %820 = vmatprep.subr.mxu0 0.0
        %821 = vmatpush2.msra.mxu0 0.0
        %822 = vmatprep.subr.mxu0 0.0
        %823 = vmatpush2.msra.mxu0 0.0
        %824 = vmatprep.subr.mxu0 0.0
        %825 = vmatpush2.msra.mxu0 0.0
        %826 = vmatprep.subr.mxu0 0.0
        %827 = vmatpush2.msra.mxu0 0.0
        %828 = vmatprep.subr.mxu0 0.0
        %829 = vmatpush2.msra.mxu0 0.0
        %830 = vmatprep.subr.mxu0 0.0
        %831 = vmatpush2.msra.mxu0 0.0
        %832 = vmatprep.subr.mxu0 0.0
        %833 = vmatpush2.msra.mxu0 0.0
        %834 = vmatprep.mubr.f32.mxu0 0.0
        %835 = vmatmul.mubr.f32.gmra.mxu0 %v755
        %v836 = vpop.f32.mrf.mxu0
        %v837 = vadd.f32 0.0, %v836
        %v838 = vpop.f32.mrf.mxu0
        %839 = vmatprep.mubr.f32.mxu0 0.0
        %840 = vmatmul.mubr.f32.gmra.mxu0 %v758
        %v841 = vpop.f32.mrf.mxu0
        %v842 = vadd.f32 0.0, %v841
        %v843 = vpop.f32.mrf.mxu0
        %844 = vmatprep.mubr.f32.mxu0 0.0
        %845 = vmatmul.mubr.f32.gmra.mxu0 %v761
        %v846 = vpop.f32.mrf.mxu0
        %v847 = vadd.f32 0.0, %v846
        %v848 = vpop.f32.mrf.mxu0
        %849 = vmatprep.mubr.f32.mxu0 0.0
        %850 = vmatmul.mubr.f32.gmra.mxu0 %v764
        %v851 = vpop.f32.mrf.mxu0
        %v852 = vadd.f32 0.0, %v851
        %v853 = vpop.f32.mrf.mxu0
        %854 = vdwg.mxu0
        %v856 = vsel %vm660, %v737, 0
        %v859 = vsel %vm660, %v738, 0
        %v862 = vsel %vm660, %v739, 0
        %v865 = vsel %vm660, %v740, 0
        %867 = vmatprep.subr.mxu0 0.0
        %868 = vmatpush1.msra.mxu0 0.0
        %869 = vmatprep.subr.mxu0 0.0
        %870 = vmatpush1.msra.mxu0 0.0
        %871 = vmatprep.subr.mxu0 0.0
        %872 = vmatpush1.msra.mxu0 0.0
        %873 = vmatprep.subr.mxu0 0.0
        %874 = vmatpush1.msra.mxu0 0.0
        %875 = vmatprep.subr.mxu0 0.0
        %876 = vmatpush1.msra.mxu0 0.0
        %877 = vmatprep.subr.mxu0 0.0
        %878 = vmatpush1.msra.mxu0 0.0
        %879 = vmatprep.subr.mxu0 0.0
        %880 = vmatpush1.msra.mxu0 0.0
        %881 = vmatprep.subr.mxu0 0.0
        %882 = vmatpush1.msra.mxu0 0.0
        %883 = vmatprep.subr.mxu0 0.0
        %884 = vmatpush1.msra.mxu0 0.0
        %885 = vmatprep.subr.mxu0 0.0
        %886 = vmatpush1.msra.mxu0 0.0
        %887 = vmatprep.subr.mxu0 0.0
        %888 = vmatpush1.msra.mxu0 0.0
        %889 = vmatprep.subr.mxu0 0.0
        %890 = vmatpush1.msra.mxu0 0.0
        %891 = vmatprep.subr.mxu0 0.0
        %892 = vmatpush1.msra.mxu0 0.0
        %893 = vmatprep.subr.mxu0 0.0
        %894 = vmatpush1.msra.mxu0 0.0
        %895 = vmatprep.subr.mxu0 0.0
        %896 = vmatpush1.msra.mxu0 0.0
        %897 = vmatprep.subr.mxu0 0.0
        %898 = vmatpush1.msra.mxu0 %v736
        %899 = vmatprep.subr.mxu0 0.0
        %900 = vmatpush2.msra.mxu0 0.0
        %901 = vmatprep.subr.mxu0 0.0
        %902 = vmatpush2.msra.mxu0 0.0
        %903 = vmatprep.subr.mxu0 0.0
        %904 = vmatpush2.msra.mxu0 0.0
        %905 = vmatprep.subr.mxu0 0.0
        %906 = vmatpush2.msra.mxu0 0.0
        %907 = vmatprep.subr.mxu0 0.0
        %908 = vmatpush2.msra.mxu0 0.0
        %909 = vmatprep.subr.mxu0 0.0
        %910 = vmatpush2.msra.mxu0 0.0
        %911 = vmatprep.subr.mxu0 0.0
        %912 = vmatpush2.msra.mxu0 0.0
        %913 = vmatprep.subr.mxu0 0.0
        %914 = vmatpush2.msra.mxu0 0.0
        %915 = vmatprep.subr.mxu0 0.0
        %916 = vmatpush2.msra.mxu0 0.0
        %917 = vmatprep.subr.mxu0 0.0
        %918 = vmatpush2.msra.mxu0 0.0
        %919 = vmatprep.subr.mxu0 0.0
        %920 = vmatpush2.msra.mxu0 0.0
        %921 = vmatprep.subr.mxu0 0.0
        %922 = vmatpush2.msra.mxu0 0.0
        %923 = vmatprep.subr.mxu0 0.0
        %924 = vmatpush2.msra.mxu0 0.0
        %925 = vmatprep.subr.mxu0 0.0
        %926 = vmatpush2.msra.mxu0 0.0
        %927 = vmatprep.subr.mxu0 0.0
        %928 = vmatpush2.msra.mxu0 0.0
        %929 = vmatprep.subr.mxu0 0.0
        %930 = vmatpush2.msra.mxu0 0.0
        %931 = vmatprep.mubr.f32.mxu0 0.0
        %932 = vmatmul.mubr.f32.gmra.mxu0 %v856
        %v933 = vpop.f32.mrf.mxu0
        %v934 = vadd.f32 %v837, %v933
        %v935 = vpop.f32.mrf.mxu0
        %936 = vmatprep.mubr.f32.mxu0 0.0
        %937 = vmatmul.mubr.f32.gmra.mxu0 %v859
        %v938 = vpop.f32.mrf.mxu0
        %v939 = vadd.f32 %v842, %v938
        %v940 = vpop.f32.mrf.mxu0
        %941 = vmatprep.mubr.f32.mxu0 0.0
        %942 = vmatmul.mubr.f32.gmra.mxu0 %v862
        %v943 = vpop.f32.mrf.mxu0
        %v944 = vadd.f32 %v847, %v943
        %v945 = vpop.f32.mrf.mxu0
        %946 = vmatprep.mubr.f32.mxu0 0.0
        %947 = vmatmul.mubr.f32.gmra.mxu0 %v865
        %v948 = vpop.f32.mrf.mxu0
        %v949 = vadd.f32 %v852, %v948
        %v950 = vpop.f32.mrf.mxu0
        %951 = vdwg.mxu0
        %953 = vset.pattern.permute.xlu0 0
        %954 = vperm.xlu0 %953, %v745
        %v955 = vpop.permute.xlu0 %954
        %958 = vset.pattern.permute.xlu0 0
        %959 = vperm.xlu0 %958, %v746
        %v960 = vpop.permute.xlu0 %959
        %963 = vset.pattern.permute.xlu0 0
        %964 = vperm.xlu0 %963, %v747
        %v965 = vpop.permute.xlu0 %964
        %968 = vset.pattern.permute.xlu0 0
        %969 = vperm.xlu0 %968, %v748
        %v970 = vpop.permute.xlu0 %969
        %v972 = vmul.f32 %v934, %v955
        %v973 = vmul.f32 %v939, %v960
        %v974 = vmul.f32 %v944, %v965
        %v975 = vmul.f32 %v949, %v970
        %977 = vset.pattern.permute.xlu0 0
        %978 = vperm.xlu0 %977, %v749
        %v979 = vpop.permute.xlu0 %978
        %982 = vset.pattern.permute.xlu0 0
        %983 = vperm.xlu0 %982, %v750
        %v984 = vpop.permute.xlu0 %983
        %987 = vset.pattern.permute.xlu0 0
        %988 = vperm.xlu0 %987, %v751
        %v989 = vpop.permute.xlu0 %988
        %992 = vset.pattern.permute.xlu0 0
        %993 = vperm.xlu0 %992, %v752
        %v994 = vpop.permute.xlu0 %993
        %v996 = vadd.f32 %v972, %v979
        %v997 = vadd.f32 %v973, %v984
        %v998 = vadd.f32 %v974, %v989
        %v999 = vadd.f32 %v975, %v994
        %v1000 = vmax.f32 %v996, 0.0
        %v1001 = vmax.f32 %v997, 0.0
        %v1002 = vmax.f32 %v998, 0.0
        %v1003 = vmax.f32 %v999, 0.0
        %v1004 = vld [vmem:[%s8] sm:$0xff]
        %v1005 = vld [vmem:[%s8 + $0x8] sm:$0xff]
        %v1006 = vld [vmem:[%s9] sm:$0xff]
        %v1007 = vld [vmem:[%s9 + $0x8] sm:$0xff]
        %v1008 = vld [vmem:[%s10] sm:$0xff]
        %v1009 = vld [vmem:[%s10 + $0x8] sm:$0xff]
        %vm1010 = vcmask 261120
        %v1012 = vsel %vm1010, %v1004, 0
        %v1015 = vsel %vm1010, %v1005, 0
        %1017 = vmatprep.subr.mxu0 0.0
        %1018 = vmatpush1.msra.mxu0 0.0
        %1019 = vmatprep.subr.mxu0 0.0
        %1020 = vmatpush1.msra.mxu0 0.0
        %1021 = vmatprep.subr.mxu0 0.0
        %1022 = vmatpush1.msra.mxu0 0.0
        %1023 = vmatprep.subr.mxu0 0.0
        %1024 = vmatpush1.msra.mxu0 0.0
        %1025 = vmatprep.subr.mxu0 0.0
        %1026 = vmatpush1.msra.mxu0 0.0
        %1027 = vmatprep.subr.mxu0 0.0
        %1028 = vmatpush1.msra.mxu0 0.0
        %1029 = vmatprep.subr.mxu0 0.0
        %1030 = vmatpush1.msra.mxu0 0.0
        %1031 = vmatprep.subr.mxu0 0.0
        %1032 = vmatpush1.msra.mxu0 0.0
        %1033 = vmatprep.subr.mxu0 0.0
        %1034 = vmatpush1.msra.mxu0 0.0
        %1035 = vmatprep.subr.mxu0 0.0
        %1036 = vmatpush1.msra.mxu0 0.0
        %1037 = vmatprep.subr.mxu0 0.0
        %1038 = vmatpush1.msra.mxu0 0.0
        %1039 = vmatprep.subr.mxu0 0.0
        %1040 = vmatpush1.msra.mxu0 0.0
        %1041 = vmatprep.subr.mxu0 0.0
        %1042 = vmatpush1.msra.mxu0 %v1003
        %1043 = vmatprep.subr.mxu0 0.0
        %1044 = vmatpush1.msra.mxu0 %v1002
        %1045 = vmatprep.subr.mxu0 0.0
        %1046 = vmatpush1.msra.mxu0 %v1001
        %1047 = vmatprep.subr.mxu0 0.0
        %1048 = vmatpush1.msra.mxu0 %v1000
        %1049 = vmatprep.subr.mxu0 0.0
        %1050 = vmatpush2.msra.mxu0 0.0
        %1051 = vmatprep.subr.mxu0 0.0
        %1052 = vmatpush2.msra.mxu0 0.0
        %1053 = vmatprep.subr.mxu0 0.0
        %1054 = vmatpush2.msra.mxu0 0.0
        %1055 = vmatprep.subr.mxu0 0.0
        %1056 = vmatpush2.msra.mxu0 0.0
        %1057 = vmatprep.subr.mxu0 0.0
        %1058 = vmatpush2.msra.mxu0 0.0
        %1059 = vmatprep.subr.mxu0 0.0
        %1060 = vmatpush2.msra.mxu0 0.0
        %1061 = vmatprep.subr.mxu0 0.0
        %1062 = vmatpush2.msra.mxu0 0.0
        %1063 = vmatprep.subr.mxu0 0.0
        %1064 = vmatpush2.msra.mxu0 0.0
        %1065 = vmatprep.subr.mxu0 0.0
        %1066 = vmatpush2.msra.mxu0 0.0
        %1067 = vmatprep.subr.mxu0 0.0
        %1068 = vmatpush2.msra.mxu0 0.0
        %1069 = vmatprep.subr.mxu0 0.0
        %1070 = vmatpush2.msra.mxu0 0.0
        %1071 = vmatprep.subr.mxu0 0.0
        %1072 = vmatpush2.msra.mxu0 0.0
        %1073 = vmatprep.subr.mxu0 0.0
        %1074 = vmatpush2.msra.mxu0 0.0
        %1075 = vmatprep.subr.mxu0 0.0
        %1076 = vmatpush2.msra.mxu0 0.0
        %1077 = vmatprep.subr.mxu0 0.0
        %1078 = vmatpush2.msra.mxu0 0.0
        %1079 = vmatprep.subr.mxu0 0.0
        %1080 = vmatpush2.msra.mxu0 0.0
        %1081 = vmatprep.mubr.f32.mxu0 0.0
        %1082 = vmatmul.mubr.f32.gmra.mxu0 %v1012
        %v1083 = vpop.f32.mrf.mxu0
        %v1084 = vadd.f32 0.0, %v1083
        %v1085 = vpop.f32.mrf.mxu0
        %1086 = vmatprep.mubr.f32.mxu0 0.0
        %1087 = vmatmul.mubr.f32.gmra.mxu0 %v1015
        %v1088 = vpop.f32.mrf.mxu0
        %v1089 = vadd.f32 0.0, %v1088
        %v1090 = vpop.f32.mrf.mxu0
        %1091 = vdwg.mxu0
        %1093 = vset.pattern.permute.xlu0 0
        %1094 = vperm.xlu0 %1093, %v1006
        %v1095 = vpop.permute.xlu0 %1094
        %1098 = vset.pattern.permute.xlu0 0
        %1099 = vperm.xlu0 %1098, %v1007
        %v1100 = vpop.permute.xlu0 %1099
        %v1102 = vmul.f32 %v1084, %v1095
        %v1103 = vmul.f32 %v1089, %v1100
        %1105 = vset.pattern.permute.xlu0 0
        %1106 = vperm.xlu0 %1105, %v1008
        %v1107 = vpop.permute.xlu0 %1106
        %1110 = vset.pattern.permute.xlu0 0
        %1111 = vperm.xlu0 %1110, %v1009
        %v1112 = vpop.permute.xlu0 %1111
        %v1114 = vadd.f32 %v1102, %v1107
        %v1115 = vadd.f32 %v1103, %v1112
        %v1116 = vmax.f32 %v1114, 0.0
        %v1117 = vmax.f32 %v1115, 0.0
        %1118 = vst.msk [vmem:[%s446] sm:$0xff] %vm515, %v1116
        %1119 = vst.msk [vmem:[%s446 + $0x8] sm:$0xff] %vm515, %v1117
        %s1120 = sand.u32 %s302, 1
        %s1121 = scalar_lea.sflag [#allocation3], %s1120
        %s1122 = sand.u32 %s302, 1
        %s1123 = smul.addr %s1122, 16
        %s1124 = scalar_lea.vmem [#allocation2], %s1123
        // Predicated region
        $region65: #{tpu_custom_call.1} parent=63 // pred_check
          %p1125 = pneg %p312
        $region66: #{tpu_custom_call.1} parent=63 // pred_check_branch
          %1127 = sbr.rel (%p1125) target = $region68
        $region67: #{tpu_custom_call.1} parent=63 // pred_region
          %s1129 = ssub.s32 256, 256
          %1130 = vsyncadd %s1121, %s1129
          %s1131 = smul.addr %s29, 2
          %s1132 = sadd.s32 %s30, %s1131
          %s1133 = smul.addr %s1132, 128
          %s1134 = scalar_lea.hbm %s11, %s1133
          %s1135 = sshll.u32 %s1124, 4
          %s1136 = int_to_ptr.vmem [resolvable:$true] %s1135
          %1141 = dma.vmem_to_hbm [thread:$0]  %s1136, 256, %s1134, %s1121, 128, 128, 8
        $region68: #{tpu_custom_call.1} parent=63 // pred_fallthru
          _
      $region64: #{tpu_custom_call.1} parent=5 // pred_fallthru
        _
      %p1142 = scmp.le.s32.totalorder 2, %s20
      // Predicated region
      $region69: #{tpu_custom_call.1} parent=5 // pred_check
        %p1143 = pneg %p1142
      $region70: #{tpu_custom_call.1} parent=5 // pred_check_branch
        %1145 = sbr.rel (%p1143) target = $region72
      $region71: #{tpu_custom_call.1} parent=5 // pred_region
        %s1146 = ssub.s32 %s20, 2
        // Predicated region
        $region73: #{tpu_custom_call.1} parent=71 // pred_check
          %p1147 = pneg %p318
        $region74: #{tpu_custom_call.1} parent=71 // pred_check_branch
          %1149 = sbr.rel (%p1147) target = $region76
        $region75: #{tpu_custom_call.1} parent=71 // pred_region
          %s1150 = sand.u32 %s303, 1
          %s1151 = scalar_lea.sflag [#allocation3], %s1150
          %s1152 = sand.u32 %s303, 1
          %s1153 = smul.addr %s1152, 16
          %s1154 = scalar_lea.vmem [#allocation2], %s1153
          %1155 = dma.done %s1151, 256
        $region76: #{tpu_custom_call.1} parent=71 // pred_fallthru
          _
      $region72: #{tpu_custom_call.1} parent=5 // pred_fallthru
        _
    $region6: #{tpu_custom_call.1} parent=1 // loop_footer
      %s24 = sadd.s32 1, %s20
    $region7: #{tpu_custom_call.1} parent=1 // loop_footer_branch
      %19 = sbr.rel target = $region3
    $region8: #{tpu_custom_call.1} parent=1 // loop_exit
      _
    %1156 = vsyncpa [#allocation3], 1
    %s1157 = scalar_lea.sflag [#allocation3], 1
    %1158 = vsyncpa %s1157, 1

</llo_original>
